<compile_context>
chip_gen: v7x
topology: tpu7x:2x2x1
jax: 0.10.0
libtpu: 0.0.40
codegen_flags: <defaults>
</compile_context>

<pallas_src>
import jax
import jax.numpy as jnp
from jax.experimental import pallas as pl
from jax.experimental.pallas import tpu as pltpu


# Cap the row tile when no explicit vmem_limit_bytes is given: keeps peak live
# VMEM ~<10 MiB, under the 16 MiB v5e scoped default (32 MiB v6e/v7x).
_MAX_TM_NO_FLAGS = 8192


def _line_kernel(x_ref,
                 w1_ref, b1_ref,
                 w2_ref, b2_ref,
                 w3_ref, b3_ref,
                 w4_ref, b4_ref,
                 w5_ref, b5_ref,
                 o_ref):
    x = x_ref[...]                                            # (1, tm) f32
    mm_dtype = w2_ref.dtype                                   # bf16 fast path / f32 exact path

    # Layer 1: in_features == 1 -> pure VPU broadcast multiply-add (no MXU).
    h = jnp.maximum(w1_ref[...] * x + b1_ref[...], 0.0)       # (20, tm) f32

    # Layers 2-4: MXU matmuls. Operands in mm_dtype (bf16 => fewer MXU passes
    # on bf16-native arrays), f32 accumulation; bias-add + ReLU stay f32 (VPU).
    h = jnp.maximum(
        jnp.dot(w2_ref[...], h.astype(mm_dtype),
                preferred_element_type=jnp.float32) + b2_ref[...], 0.0)   # (64, tm)
    h = jnp.maximum(
        jnp.dot(w3_ref[...], h.astype(mm_dtype),
                preferred_element_type=jnp.float32) + b3_ref[...], 0.0)   # (128, tm)
    h = jnp.maximum(
        jnp.dot(w4_ref[...], h.astype(mm_dtype),
                preferred_element_type=jnp.float32) + b4_ref[...], 0.0)   # (64, tm)

    # Layer 5: out_features == 1 -> elementwise multiply + sublane reduce (XLU).
    y = jnp.sum(w5_ref[...] * h, axis=0, keepdims=True) + b5_ref[...]     # (1, tm)
    o_ref[...] = y.astype(o_ref.dtype)


def _build_in_specs(tm, ops, single_buffer_weights):
    in_specs = [pl.BlockSpec((1, tm), lambda i: (0, i))]      # x tile (lane-dense)
    for op in ops:
        if single_buffer_weights:
            # Constant block index across the grid -> resident; 1 buffer saves
            # the redundant double-buffer copy of the weights.
            spec = pl.BlockSpec(op.shape, lambda i: (0, 0),
                                pipeline_mode=pl.Buffered(1))
        else:
            spec = pl.BlockSpec(op.shape, lambda i: (0, 0))
        in_specs.append(spec)
    return in_specs


def _run_pallas(x_row, ops, tm, n_pad, vmem_limit_bytes, single_buffer_weights):
    flops = 2 * n_pad * (1 * 20 + 20 * 64 + 64 * 128 + 128 * 64 + 64 * 1)
    bytes_accessed = 4 * 2 * n_pad + sum(int(o.size) * o.dtype.itemsize for o in ops)
    cost = pl.CostEstimate(flops=flops, transcendentals=0,
                           bytes_accessed=bytes_accessed)

    return pl.pallas_call(
        _line_kernel,
        out_shape=jax.ShapeDtypeStruct((1, n_pad), x_row.dtype),
        grid_spec=pltpu.PrefetchScalarGridSpec(
            num_scalar_prefetch=0,
            grid=(n_pad // tm,),
            in_specs=_build_in_specs(tm, ops, single_buffer_weights),
            out_specs=pl.BlockSpec((1, tm), lambda i: (0, i)),
        ),
        compiler_params=pltpu.CompilerParams(
            dimension_semantics=("parallel",),
            vmem_limit_bytes=vmem_limit_bytes),
        cost_estimate=cost,
    )(x_row, *ops)


def line_forward(x, params, *, tm=4096, use_bf16=True, vmem_limit_bytes=None):
    """x: (N, 1) float32. params: list of (W, b) in PyTorch layout:
    W: (out, in), b: (out,). Returns (N, 1) float32."""
    N, F = x.shape
    assert F == 1

    # --- Row-tile sanitization ---------------------------------------------
    # multiple of 128 lanes, >= 128; VMEM-safe cap unless the caller lifts the
    # scoped limit; keep >= 2 grid steps whenever the padded batch allows it
    # (v7x megacore: the "parallel" axis is the only cross-TC sharding lever).
    tm = max(128, (tm // 128) * 128)
    if vmem_limit_bytes is None:
        tm = min(tm, _MAX_TM_NO_FLAGS)
    n_pad128 = pl.cdiv(N, 128) * 128
    if n_pad128 >= 256:
        tm = min(tm, max(128, (n_pad128 // 2) // 128 * 128))
    else:
        tm = min(tm, n_pad128)
    n_pad = pl.cdiv(N, tm) * tm

    # Lane-dense input: batch on the lane axis, zero-padded to n_pad.
    # (Padded lanes carry ReLU(b1)-derived garbage through the layers; harmless
    #  because we never reduce across lanes and slice the output back to [:N].)
    x_row = jnp.pad(x[:, 0], (0, n_pad - N)).reshape(1, n_pad)

    (w1, b1), (w2, b2), (w3, b3), (w4, b4), (w5, b5) = params
    mm_dtype = jnp.bfloat16 if use_bf16 else jnp.float32
    ops = [
        w1,                   b1.reshape(-1, 1),    # (20,1),   (20,1)   f32
        w2.astype(mm_dtype),  b2.reshape(-1, 1),    # (64,20),  (64,1)
        w3.astype(mm_dtype),  b3.reshape(-1, 1),    # (128,64), (128,1)
        w4.astype(mm_dtype),  b4.reshape(-1, 1),    # (64,128), (64,1)
        w5.T,                 b5.reshape(1, 1),     # (64,1),   (1,1)    f32
    ]

    try:
        out = _run_pallas(x_row, ops, tm, n_pad, vmem_limit_bytes,
                          single_buffer_weights=True)
    except Exception:
        # pipeline_mode=pl.Buffered(1) is a micro-opt; fall back to default
        # double-buffering if this jax version rejects it.
        out = _run_pallas(x_row, ops, tm, n_pad, vmem_limit_bytes,
                          single_buffer_weights=False)

    return out[0, :N].reshape(N, 1)


def init_line_params(key):
    """PyTorch nn.Linear-style init: W:(out,in), b:(out,), U(-1/sqrt(fan_in), +)."""
    dims = [(1, 20), (20, 64), (64, 128), (128, 64), (64, 1)]
    params = []
    for (fan_in, fan_out) in dims:
        key, kw, kb = jax.random.split(key, 3)
        bound = 1.0 / jnp.sqrt(jnp.float32(fan_in))
        w = jax.random.uniform(kw, (fan_out, fan_in), jnp.float32, -bound, bound)
        b = jax.random.uniform(kb, (fan_out,), jnp.float32, -bound, bound)
        params.append((w, b))
    return params


def line_reference(x, params):
    """Pure-JAX f32 reference (matches PyTorch forward)."""
    h = x
    for idx, (w, b) in enumerate(params):
        h = h @ w.T + b
        if idx < len(params) - 1:
            h = jnp.maximum(h, 0.0)
    return h


def line_reference_bf16(x, params):
    """Reference that emulates the kernel's bf16-operand / f32-accum matmuls."""
    (w1, b1), (w2, b2), (w3, b3), (w4, b4), (w5, b5) = params
    h = jnp.maximum(x @ w1.T + b1, 0.0)
    for w, b in ((w2, b2), (w3, b3), (w4, b4)):
        h = jnp.maximum(
            jnp.dot(h.astype(jnp.bfloat16), w.astype(jnp.bfloat16).T,
                    preferred_element_type=jnp.float32) + b, 0.0)
    return h @ w5.T + b5


if __name__ == "__main__":
    key = jax.random.PRNGKey(0)
    key_x, key_p = jax.random.split(key)
    params = init_line_params(key_p)

    x_small = jax.random.normal(key_x, (8, 1), jnp.float32)    # single tile
    x_big = jax.random.normal(key_x, (640, 1), jnp.float32)    # padding + multi-step grid

    # 1) Exact-semantics validation path (f32 matmuls) vs pure-JAX reference.
    for x in (x_small, x_big):
        out = jax.block_until_ready(line_forward(x, params, use_bf16=False))
        ref = line_reference(x, params)
        assert out.shape == x.shape
        assert jnp.allclose(out, ref, atol=1e-5, rtol=1e-5), "f32 path mismatch"

    # 2) Fast path: bf16 operands for the three middle matmuls (f32 accum).
    for x in (x_small, x_big):
        out = jax.block_until_ready(line_forward(x, params))   # use_bf16=True
        ref16 = line_reference_bf16(x, params)
        assert out.shape == x.shape
        # Tight vs. the bf16-emulating reference (only accumulation-order noise).
        assert jnp.allclose(out, ref16, atol=2e-3, rtol=2e-3), "bf16 path mismatch"
        # Loose sanity vs. the full-f32 reference.
        ref = line_reference(x, params)
        scale = jnp.maximum(1.0, jnp.max(jnp.abs(ref)))
        assert jnp.max(jnp.abs(out - ref)) <= 0.1 * scale, "bf16 path drifted from f32 ref"

    print("KERNEL_OK")
</pallas_src>

<mosaic_0001>
module attributes {stable_mosaic.version = 11 : i64} {
  func.func @_line_kernel(%arg0: i32, %arg1: memref<1x128xf32, #tpu.memory_space<vmem>>, %arg2: memref<20x1xf32, #tpu.memory_space<vmem>>, %arg3: memref<20x1xf32, #tpu.memory_space<vmem>>, %arg4: memref<64x20xf32, #tpu.memory_space<vmem>>, %arg5: memref<64x1xf32, #tpu.memory_space<vmem>>, %arg6: memref<128x64xf32, #tpu.memory_space<vmem>>, %arg7: memref<128x1xf32, #tpu.memory_space<vmem>>, %arg8: memref<64x128xf32, #tpu.memory_space<vmem>>, %arg9: memref<64x1xf32, #tpu.memory_space<vmem>>, %arg10: memref<64x1xf32, #tpu.memory_space<vmem>>, %arg11: memref<1x1xf32, #tpu.memory_space<vmem>>, %arg12: memref<1x128xf32, #tpu.memory_space<vmem>>) attributes {dimension_semantics = [#tpu.dimension_semantics<parallel>], iteration_bounds = array<i64: 1>, scalar_prefetch = 0 : i64, scratch_operands = 0 : i64, tpu.core_type = #tpu.core_type<tc>, window_params = [{transform_indices = @transform_0, window_bounds = array<i64: 1, 128>}, {pipeline_mode = #tpu.pipeline_mode<synchronous>, transform_indices = @transform_1, window_bounds = array<i64: 20, 1>}, {pipeline_mode = #tpu.pipeline_mode<synchronous>, transform_indices = @transform_2, window_bounds = array<i64: 20, 1>}, {pipeline_mode = #tpu.pipeline_mode<synchronous>, transform_indices = @transform_3, window_bounds = array<i64: 64, 20>}, {pipeline_mode = #tpu.pipeline_mode<synchronous>, transform_indices = @transform_4, window_bounds = array<i64: 64, 1>}, {pipeline_mode = #tpu.pipeline_mode<synchronous>, transform_indices = @transform_5, window_bounds = array<i64: 128, 64>}, {pipeline_mode = #tpu.pipeline_mode<synchronous>, transform_indices = @transform_6, window_bounds = array<i64: 128, 1>}, {pipeline_mode = #tpu.pipeline_mode<synchronous>, transform_indices = @transform_7, window_bounds = array<i64: 64, 128>}, {pipeline_mode = #tpu.pipeline_mode<synchronous>, transform_indices = @transform_8, window_bounds = array<i64: 64, 1>}, {pipeline_mode = #tpu.pipeline_mode<synchronous>, transform_indices = @transform_9, window_bounds = array<i64: 64, 1>}, {pipeline_mode = #tpu.pipeline_mode<synchronous>, transform_indices = @transform_10, window_bounds = array<i64: 1, 1>}, {transform_indices = @transform_11, window_bounds = array<i64: 1, 128>}]} {
    %c0 = arith.constant 0 : index
    %c0_0 = arith.constant 0 : index
    %0 = vector.load %arg1[%c0, %c0_0] : memref<1x128xf32, #tpu.memory_space<vmem>>, vector<1x128xf32>
    %c0_1 = arith.constant 0 : index
    %c0_2 = arith.constant 0 : index
    %1 = vector.load %arg2[%c0_1, %c0_2] : memref<20x1xf32, #tpu.memory_space<vmem>>, vector<20x1xf32>
    %2 = vector.broadcast %1 : vector<20x1xf32> to vector<20x128xf32>
    %3 = vector.broadcast %0 : vector<1x128xf32> to vector<20x128xf32>
    %4 = arith.mulf %2, %3 : vector<20x128xf32>
    %c0_3 = arith.constant 0 : index
    %c0_4 = arith.constant 0 : index
    %5 = vector.load %arg3[%c0_3, %c0_4] : memref<20x1xf32, #tpu.memory_space<vmem>>, vector<20x1xf32>
    %6 = vector.broadcast %5 : vector<20x1xf32> to vector<20x128xf32>
    %7 = arith.addf %4, %6 : vector<20x128xf32>
    %cst = arith.constant 0.000000e+00 : f32
    %8 = vector.broadcast %cst : f32 to vector<20x128xf32>
    %9 = arith.maximumf %7, %8 : vector<20x128xf32>
    %c0_5 = arith.constant 0 : index
    %c0_6 = arith.constant 0 : index
    %10 = vector.load %arg4[%c0_5, %c0_6] : memref<64x20xf32, #tpu.memory_space<vmem>>, vector<64x20xf32>
    %cst_7 = arith.constant dense<0.000000e+00> : vector<64x128xf32>
    %11 = tpu.matmul %10, %9, %cst_7 {dimension_numbers = #tpu.dot_dimension_numbers<[1], [0], [0], [1], [0, 0, 1, 1], [], []>} : vector<64x20xf32>, vector<20x128xf32>, vector<64x128xf32> -> vector<64x128xf32>
    %c0_8 = arith.constant 0 : index
    %c0_9 = arith.constant 0 : index
    %12 = vector.load %arg5[%c0_8, %c0_9] : memref<64x1xf32, #tpu.memory_space<vmem>>, vector<64x1xf32>
    %13 = vector.broadcast %12 : vector<64x1xf32> to vector<64x128xf32>
    %14 = arith.addf %11, %13 : vector<64x128xf32>
    %cst_10 = arith.constant 0.000000e+00 : f32
    %15 = vector.broadcast %cst_10 : f32 to vector<64x128xf32>
    %16 = arith.maximumf %14, %15 : vector<64x128xf32>
    %c0_11 = arith.constant 0 : index
    %c0_12 = arith.constant 0 : index
    %17 = vector.load %arg6[%c0_11, %c0_12] : memref<128x64xf32, #tpu.memory_space<vmem>>, vector<128x64xf32>
    %cst_13 = arith.constant dense<0.000000e+00> : vector<128x128xf32>
    %18 = tpu.matmul %17, %16, %cst_13 {dimension_numbers = #tpu.dot_dimension_numbers<[1], [0], [0], [1], [0, 0, 1, 1], [], []>} : vector<128x64xf32>, vector<64x128xf32>, vector<128x128xf32> -> vector<128x128xf32>
    %c0_14 = arith.constant 0 : index
    %c0_15 = arith.constant 0 : index
    %19 = vector.load %arg7[%c0_14, %c0_15] : memref<128x1xf32, #tpu.memory_space<vmem>>, vector<128x1xf32>
    %20 = vector.broadcast %19 : vector<128x1xf32> to vector<128x128xf32>
    %21 = arith.addf %18, %20 : vector<128x128xf32>
    %cst_16 = arith.constant 0.000000e+00 : f32
    %22 = vector.broadcast %cst_16 : f32 to vector<128x128xf32>
    %23 = arith.maximumf %21, %22 : vector<128x128xf32>
    %c0_17 = arith.constant 0 : index
    %c0_18 = arith.constant 0 : index
    %24 = vector.load %arg8[%c0_17, %c0_18] : memref<64x128xf32, #tpu.memory_space<vmem>>, vector<64x128xf32>
    %cst_19 = arith.constant dense<0.000000e+00> : vector<64x128xf32>
    %25 = tpu.matmul %24, %23, %cst_19 {dimension_numbers = #tpu.dot_dimension_numbers<[1], [0], [0], [1], [0, 0, 1, 1], [], []>} : vector<64x128xf32>, vector<128x128xf32>, vector<64x128xf32> -> vector<64x128xf32>
    %c0_20 = arith.constant 0 : index
    %c0_21 = arith.constant 0 : index
    %26 = vector.load %arg9[%c0_20, %c0_21] : memref<64x1xf32, #tpu.memory_space<vmem>>, vector<64x1xf32>
    %27 = vector.broadcast %26 : vector<64x1xf32> to vector<64x128xf32>
    %28 = arith.addf %25, %27 : vector<64x128xf32>
    %cst_22 = arith.constant 0.000000e+00 : f32
    %29 = vector.broadcast %cst_22 : f32 to vector<64x128xf32>
    %30 = arith.maximumf %28, %29 : vector<64x128xf32>
    %c0_23 = arith.constant 0 : index
    %c0_24 = arith.constant 0 : index
    %31 = vector.load %arg10[%c0_23, %c0_24] : memref<64x1xf32, #tpu.memory_space<vmem>>, vector<64x1xf32>
    %32 = vector.broadcast %31 : vector<64x1xf32> to vector<64x128xf32>
    %33 = arith.mulf %32, %30 : vector<64x128xf32>
    %cst_25 = arith.constant dense<0.000000e+00> : vector<128xf32>
    %34 = vector.multi_reduction <add>, %33, %cst_25 [0] : vector<64x128xf32> to vector<128xf32>
    %35 = vector.shape_cast %34 : vector<128xf32> to vector<1x128xf32>
    %c0_26 = arith.constant 0 : index
    %c0_27 = arith.constant 0 : index
    %36 = vector.load %arg11[%c0_26, %c0_27] : memref<1x1xf32, #tpu.memory_space<vmem>>, vector<1x1xf32>
    %37 = vector.broadcast %36 : vector<1x1xf32> to vector<1x128xf32>
    %38 = arith.addf %35, %37 : vector<1x128xf32>
    %c0_28 = arith.constant 0 : index
    %c0_29 = arith.constant 0 : index
    %39 = vector.load %arg12[%c0_28, %c0_29] : memref<1x128xf32, #tpu.memory_space<vmem>>, vector<1x128xf32>
    tpu.vector_store %arg12[%c0_28, %c0_29], %38 {strides = array<i32>} : memref<1x128xf32, #tpu.memory_space<vmem>>, vector<1x128xf32>,
    return
  }
  func.func @transform_0(%arg0: i32) -> (i32, i32) {
    %c0_i32 = arith.constant 0 : i32
    %c0_i32_0 = arith.constant 0 : i32
    return %c0_i32, %arg0 : i32, i32
  }
  func.func @transform_1(%arg0: i32) -> (i32, i32) {
    %c0_i32 = arith.constant 0 : i32
    %c0_i32_0 = arith.constant 0 : i32
    %c0_i32_1 = arith.constant 0 : i32
    return %c0_i32, %c0_i32_0 : i32, i32
  }
  func.func @transform_2(%arg0: i32) -> (i32, i32) {
    %c0_i32 = arith.constant 0 : i32
    %c0_i32_0 = arith.constant 0 : i32
    %c0_i32_1 = arith.constant 0 : i32
    return %c0_i32, %c0_i32_0 : i32, i32
  }
  func.func @transform_3(%arg0: i32) -> (i32, i32) {
    %c0_i32 = arith.constant 0 : i32
    %c0_i32_0 = arith.constant 0 : i32
    %c0_i32_1 = arith.constant 0 : i32
    return %c0_i32, %c0_i32_0 : i32, i32
  }
  func.func @transform_4(%arg0: i32) -> (i32, i32) {
    %c0_i32 = arith.constant 0 : i32
    %c0_i32_0 = arith.constant 0 : i32
    %c0_i32_1 = arith.constant 0 : i32
    return %c0_i32, %c0_i32_0 : i32, i32
  }
  func.func @transform_5(%arg0: i32) -> (i32, i32) {
    %c0_i32 = arith.constant 0 : i32
    %c0_i32_0 = arith.constant 0 : i32
    %c0_i32_1 = arith.constant 0 : i32
    return %c0_i32, %c0_i32_0 : i32, i32
  }
  func.func @transform_6(%arg0: i32) -> (i32, i32) {
    %c0_i32 = arith.constant 0 : i32
    %c0_i32_0 = arith.constant 0 : i32
    %c0_i32_1 = arith.constant 0 : i32
    return %c0_i32, %c0_i32_0 : i32, i32
  }
  func.func @transform_7(%arg0: i32) -> (i32, i32) {
    %c0_i32 = arith.constant 0 : i32
    %c0_i32_0 = arith.constant 0 : i32
    %c0_i32_1 = arith.constant 0 : i32
    return %c0_i32, %c0_i32_0 : i32, i32
  }
  func.func @transform_8(%arg0: i32) -> (i32, i32) {
    %c0_i32 = arith.constant 0 : i32
    %c0_i32_0 = arith.constant 0 : i32
    %c0_i32_1 = arith.constant 0 : i32
    return %c0_i32, %c0_i32_0 : i32, i32
  }
  func.func @transform_9(%arg0: i32) -> (i32, i32) {
    %c0_i32 = arith.constant 0 : i32
    %c0_i32_0 = arith.constant 0 : i32
    %c0_i32_1 = arith.constant 0 : i32
    return %c0_i32, %c0_i32_0 : i32, i32
  }
  func.func @transform_10(%arg0: i32) -> (i32, i32) {
    %c0_i32 = arith.constant 0 : i32
    %c0_i32_0 = arith.constant 0 : i32
    %c0_i32_1 = arith.constant 0 : i32
    return %c0_i32, %c0_i32_0 : i32, i32
  }
  func.func @transform_11(%arg0: i32) -> (i32, i32) {
    %c0_i32 = arith.constant 0 : i32
    %c0_i32_0 = arith.constant 0 : i32
    return %c0_i32, %arg0 : i32, i32
  }
}

module attributes {stable_mosaic.version = 11 : i64} {
  func.func @_line_kernel(%arg0: i32, %arg1: memref<1x128xf32, #tpu.memory_space<vmem>>, %arg2: memref<20x1xf32, #tpu.memory_space<vmem>>, %arg3: memref<20x1xf32, #tpu.memory_space<vmem>>, %arg4: memref<64x20xf32, #tpu.memory_space<vmem>>, %arg5: memref<64x1xf32, #tpu.memory_space<vmem>>, %arg6: memref<128x64xf32, #tpu.memory_space<vmem>>, %arg7: memref<128x1xf32, #tpu.memory_space<vmem>>, %arg8: memref<64x128xf32, #tpu.memory_space<vmem>>, %arg9: memref<64x1xf32, #tpu.memory_space<vmem>>, %arg10: memref<64x1xf32, #tpu.memory_space<vmem>>, %arg11: memref<1x1xf32, #tpu.memory_space<vmem>>, %arg12: memref<1x128xf32, #tpu.memory_space<vmem>>) attributes {dimension_semantics = [#tpu.dimension_semantics<parallel>], iteration_bounds = array<i64: 1>, scalar_prefetch = 0 : i64, scratch_operands = 0 : i64, tpu.core_type = #tpu.core_type<tc>, window_params = [{transform_indices = @transform_0, window_bounds = array<i64: 1, 128>}, {pipeline_mode = #tpu.pipeline_mode<synchronous>, transform_indices = @transform_1, window_bounds = array<i64: 20, 1>}, {pipeline_mode = #tpu.pipeline_mode<synchronous>, transform_indices = @transform_2, window_bounds = array<i64: 20, 1>}, {pipeline_mode = #tpu.pipeline_mode<synchronous>, transform_indices = @transform_3, window_bounds = array<i64: 64, 20>}, {pipeline_mode = #tpu.pipeline_mode<synchronous>, transform_indices = @transform_4, window_bounds = array<i64: 64, 1>}, {pipeline_mode = #tpu.pipeline_mode<synchronous>, transform_indices = @transform_5, window_bounds = array<i64: 128, 64>}, {pipeline_mode = #tpu.pipeline_mode<synchronous>, transform_indices = @transform_6, window_bounds = array<i64: 128, 1>}, {pipeline_mode = #tpu.pipeline_mode<synchronous>, transform_indices = @transform_7, window_bounds = array<i64: 64, 128>}, {pipeline_mode = #tpu.pipeline_mode<synchronous>, transform_indices = @transform_8, window_bounds = array<i64: 64, 1>}, {pipeline_mode = #tpu.pipeline_mode<synchronous>, transform_indices = @transform_9, window_bounds = array<i64: 64, 1>}, {pipeline_mode = #tpu.pipeline_mode<synchronous>, transform_indices = @transform_10, window_bounds = array<i64: 1, 1>}, {transform_indices = @transform_11, window_bounds = array<i64: 1, 128>}]} {
    %c0 = arith.constant 0 : index
    %c0_0 = arith.constant 0 : index
    %0 = vector.load %arg1[%c0, %c0_0] : memref<1x128xf32, #tpu.memory_space<vmem>>, vector<1x128xf32>
    %c0_1 = arith.constant 0 : index
    %c0_2 = arith.constant 0 : index
    %1 = vector.load %arg2[%c0_1, %c0_2] : memref<20x1xf32, #tpu.memory_space<vmem>>, vector<20x1xf32>
    %2 = vector.broadcast %1 : vector<20x1xf32> to vector<20x128xf32>
    %3 = vector.broadcast %0 : vector<1x128xf32> to vector<20x128xf32>
    %4 = arith.mulf %2, %3 : vector<20x128xf32>
    %c0_3 = arith.constant 0 : index
    %c0_4 = arith.constant 0 : index
    %5 = vector.load %arg3[%c0_3, %c0_4] : memref<20x1xf32, #tpu.memory_space<vmem>>, vector<20x1xf32>
    %6 = vector.broadcast %5 : vector<20x1xf32> to vector<20x128xf32>
    %7 = arith.addf %4, %6 : vector<20x128xf32>
    %cst = arith.constant 0.000000e+00 : f32
    %8 = vector.broadcast %cst : f32 to vector<20x128xf32>
    %9 = arith.maximumf %7, %8 : vector<20x128xf32>
    %c0_5 = arith.constant 0 : index
    %c0_6 = arith.constant 0 : index
    %10 = vector.load %arg4[%c0_5, %c0_6] : memref<64x20xf32, #tpu.memory_space<vmem>>, vector<64x20xf32>
    %cst_7 = arith.constant dense<0.000000e+00> : vector<64x128xf32>
    %11 = tpu.matmul %10, %9, %cst_7 {dimension_numbers = #tpu.dot_dimension_numbers<[1], [0], [0], [1], [0, 0, 1, 1], [], []>} : vector<64x20xf32>, vector<20x128xf32>, vector<64x128xf32> -> vector<64x128xf32>
    %c0_8 = arith.constant 0 : index
    %c0_9 = arith.constant 0 : index
    %12 = vector.load %arg5[%c0_8, %c0_9] : memref<64x1xf32, #tpu.memory_space<vmem>>, vector<64x1xf32>
    %13 = vector.broadcast %12 : vector<64x1xf32> to vector<64x128xf32>
    %14 = arith.addf %11, %13 : vector<64x128xf32>
    %cst_10 = arith.constant 0.000000e+00 : f32
    %15 = vector.broadcast %cst_10 : f32 to vector<64x128xf32>
    %16 = arith.maximumf %14, %15 : vector<64x128xf32>
    %c0_11 = arith.constant 0 : index
    %c0_12 = arith.constant 0 : index
    %17 = vector.load %arg6[%c0_11, %c0_12] : memref<128x64xf32, #tpu.memory_space<vmem>>, vector<128x64xf32>
    %cst_13 = arith.constant dense<0.000000e+00> : vector<128x128xf32>
    %18 = tpu.matmul %17, %16, %cst_13 {dimension_numbers = #tpu.dot_dimension_numbers<[1], [0], [0], [1], [0, 0, 1, 1], [], []>} : vector<128x64xf32>, vector<64x128xf32>, vector<128x128xf32> -> vector<128x128xf32>
    %c0_14 = arith.constant 0 : index
    %c0_15 = arith.constant 0 : index
    %19 = vector.load %arg7[%c0_14, %c0_15] : memref<128x1xf32, #tpu.memory_space<vmem>>, vector<128x1xf32>
    %20 = vector.broadcast %19 : vector<128x1xf32> to vector<128x128xf32>
    %21 = arith.addf %18, %20 : vector<128x128xf32>
    %cst_16 = arith.constant 0.000000e+00 : f32
    %22 = vector.broadcast %cst_16 : f32 to vector<128x128xf32>
    %23 = arith.maximumf %21, %22 : vector<128x128xf32>
    %c0_17 = arith.constant 0 : index
    %c0_18 = arith.constant 0 : index
    %24 = vector.load %arg8[%c0_17, %c0_18] : memref<64x128xf32, #tpu.memory_space<vmem>>, vector<64x128xf32>
    %cst_19 = arith.constant dense<0.000000e+00> : vector<64x128xf32>
    %25 = tpu.matmul %24, %23, %cst_19 {dimension_numbers = #tpu.dot_dimension_numbers<[1], [0], [0], [1], [0, 0, 1, 1], [], []>} : vector<64x128xf32>, vector<128x128xf32>, vector<64x128xf32> -> vector<64x128xf32>
    %c0_20 = arith.constant 0 : index
    %c0_21 = arith.constant 0 : index
    %26 = vector.load %arg9[%c0_20, %c0_21] : memref<64x1xf32, #tpu.memory_space<vmem>>, vector<64x1xf32>
    %27 = vector.broadcast %26 : vector<64x1xf32> to vector<64x128xf32>
    %28 = arith.addf %25, %27 : vector<64x128xf32>
    %cst_22 = arith.constant 0.000000e+00 : f32
    %29 = vector.broadcast %cst_22 : f32 to vector<64x128xf32>
    %30 = arith.maximumf %28, %29 : vector<64x128xf32>
    %c0_23 = arith.constant 0 : index
    %c0_24 = arith.constant 0 : index
    %31 = vector.load %arg10[%c0_23, %c0_24] : memref<64x1xf32, #tpu.memory_space<vmem>>, vector<64x1xf32>
    %32 = vector.broadcast %31 : vector<64x1xf32> to vector<64x128xf32>
    %33 = arith.mulf %32, %30 : vector<64x128xf32>
    %cst_25 = arith.constant dense<0.000000e+00> : vector<128xf32>
    %34 = vector.multi_reduction <add>, %33, %cst_25 [0] : vector<64x128xf32> to vector<128xf32>
    %35 = vector.shape_cast %34 : vector<128xf32> to vector<1x128xf32>
    %c0_26 = arith.constant 0 : index
    %c0_27 = arith.constant 0 : index
    %36 = vector.load %arg11[%c0_26, %c0_27] : memref<1x1xf32, #tpu.memory_space<vmem>>, vector<1x1xf32>
    %37 = vector.broadcast %36 : vector<1x1xf32> to vector<1x128xf32>
    %38 = arith.addf %35, %37 : vector<1x128xf32>
    %c0_28 = arith.constant 0 : index
    %c0_29 = arith.constant 0 : index
    %39 = vector.load %arg12[%c0_28, %c0_29] : memref<1x128xf32, #tpu.memory_space<vmem>>, vector<1x128xf32>
    tpu.vector_store %arg12[%c0_28, %c0_29], %38 {strides = array<i32>} : memref<1x128xf32, #tpu.memory_space<vmem>>, vector<1x128xf32>,
    return
  }
  func.func @transform_0(%arg0: i32) -> (i32, i32) {
    %c0_i32 = arith.constant 0 : i32
    %c0_i32_0 = arith.constant 0 : i32
    return %c0_i32, %arg0 : i32, i32
  }
  func.func @transform_1(%arg0: i32) -> (i32, i32) {
    %c0_i32 = arith.constant 0 : i32
    %c0_i32_0 = arith.constant 0 : i32
    %c0_i32_1 = arith.constant 0 : i32
    return %c0_i32, %c0_i32_0 : i32, i32
  }
  func.func @transform_2(%arg0: i32) -> (i32, i32) {
    %c0_i32 = arith.constant 0 : i32
    %c0_i32_0 = arith.constant 0 : i32
    %c0_i32_1 = arith.constant 0 : i32
    return %c0_i32, %c0_i32_0 : i32, i32
  }
  func.func @transform_3(%arg0: i32) -> (i32, i32) {
    %c0_i32 = arith.constant 0 : i32
    %c0_i32_0 = arith.constant 0 : i32
    %c0_i32_1 = arith.constant 0 : i32
    return %c0_i32, %c0_i32_0 : i32, i32
  }
  func.func @transform_4(%arg0: i32) -> (i32, i32) {
    %c0_i32 = arith.constant 0 : i32
    %c0_i32_0 = arith.constant 0 : i32
    %c0_i32_1 = arith.constant 0 : i32
    return %c0_i32, %c0_i32_0 : i32, i32
  }
  func.func @transform_5(%arg0: i32) -> (i32, i32) {
    %c0_i32 = arith.constant 0 : i32
    %c0_i32_0 = arith.constant 0 : i32
    %c0_i32_1 = arith.constant 0 : i32
    return %c0_i32, %c0_i32_0 : i32, i32
  }
  func.func @transform_6(%arg0: i32) -> (i32, i32) {
    %c0_i32 = arith.constant 0 : i32
    %c0_i32_0 = arith.constant 0 : i32
    %c0_i32_1 = arith.constant 0 : i32
    return %c0_i32, %c0_i32_0 : i32, i32
  }
  func.func @transform_7(%arg0: i32) -> (i32, i32) {
    %c0_i32 = arith.constant 0 : i32
    %c0_i32_0 = arith.constant 0 : i32
    %c0_i32_1 = arith.constant 0 : i32
    return %c0_i32, %c0_i32_0 : i32, i32
  }
  func.func @transform_8(%arg0: i32) -> (i32, i32) {
    %c0_i32 = arith.constant 0 : i32
    %c0_i32_0 = arith.constant 0 : i32
    %c0_i32_1 = arith.constant 0 : i32
    return %c0_i32, %c0_i32_0 : i32, i32
  }
  func.func @transform_9(%arg0: i32) -> (i32, i32) {
    %c0_i32 = arith.constant 0 : i32
    %c0_i32_0 = arith.constant 0 : i32
    %c0_i32_1 = arith.constant 0 : i32
    return %c0_i32, %c0_i32_0 : i32, i32
  }
  func.func @transform_10(%arg0: i32) -> (i32, i32) {
    %c0_i32 = arith.constant 0 : i32
    %c0_i32_0 = arith.constant 0 : i32
    %c0_i32_1 = arith.constant 0 : i32
    return %c0_i32, %c0_i32_0 : i32, i32
  }
  func.func @transform_11(%arg0: i32) -> (i32, i32) {
    %c0_i32 = arith.constant 0 : i32
    %c0_i32_0 = arith.constant 0 : i32
    return %c0_i32, %arg0 : i32, i32
  }
}

</mosaic_0001>

<llo_original>
// kernel: tpu_custom_call.1
$region0: #{tpu_custom_call.1}
  #allocation0 [shape = 'u32[]', space=smem, size = 0x4, offset = 0x4, fixed_abs, tag = 'smem constant byte address 0x4 - core index']
  #allocation1 [shape = 'u32[144,128]{1,0:T(1,128)}', space=vmem, size = 0x12000, scoped, tag = 'internal scratch']
  #allocation2 [shape = 'f32[1,1]{1,0:T(1,128)S(1)}', space=vmem, size = 0x200, scoped, tag = 'scoped memory for tpu_custom_call.1']
  %s0 = inlined_call_operand.vmem [shape: f32[1,128], index: 0, kind: input, shape index: {}]
  %s1 = inlined_call_operand.vmem [shape: f32[20,1], index: 1, kind: input, shape index: {}]
  %s2 = inlined_call_operand.vmem [shape: f32[20,1], index: 2, kind: input, shape index: {}]
  %s3 = inlined_call_operand.vmem [shape: f32[64,20], index: 3, kind: input, shape index: {}]
  %s4 = inlined_call_operand.vmem [shape: f32[64,1], index: 4, kind: input, shape index: {}]
  %s5 = inlined_call_operand.vmem [shape: f32[128,64], index: 5, kind: input, shape index: {}]
  %s6 = inlined_call_operand.vmem [shape: f32[128,1], index: 6, kind: input, shape index: {}]
  %s7 = inlined_call_operand.vmem [shape: f32[64,128], index: 7, kind: input, shape index: {}]
  %s8 = inlined_call_operand.vmem [shape: f32[64,1], index: 8, kind: input, shape index: {}]
  %s9 = inlined_call_operand.vmem [shape: f32[64,1], index: 9, kind: input, shape index: {}]
  %s10 = inlined_call_operand.<no memory space> [shape: f32[1,1], index: 10, kind: input, shape index: {}]
  %s11 = inlined_call_operand.hbm [shape: f32[1,128], index: 11, kind: output, shape index: {}]
  %s12 = sld [smem:[#allocation0]]
  $region54: #{tpu_custom_call.1} parent=0
    _
  %s14 = ssub.s32 1, %s12
  %s15 = scalar_select 0, %s14, %s12
  %v16 = vstv %s10
  %17 = vst [vmem:[#allocation2] sm:$0x1] %v16
  $region1: #{tpu_custom_call.1} parent=0
    #allocation3 [shape = 'u8[512]{0}', space=vmem, size = 0x400, scoped, tag = 'output window, operand 0, single buffered']
    #allocation4 [shape = 's32[1]{0}', space=sflag, size = 0x4, scoped, tag = 'scoped memory for tpu_custom_call.1']
    %18 = vsyncpa [#allocation4], 0
    // Predicated region
    $region2: #{tpu_custom_call.1} parent=1 // pred_check
      _
    $region3: #{tpu_custom_call.1} parent=1 // pred_check_branch
      %20 = sbr.rel (0) target = $region5
    $region4: #{tpu_custom_call.1} parent=1 // pred_region
      _
    $region5: #{tpu_custom_call.1} parent=1 // pred_fallthru
      _
    // Predicated region
    $region6: #{tpu_custom_call.1} parent=1 // pred_check
      _
    $region7: #{tpu_custom_call.1} parent=1 // pred_check_branch
      %22 = sbr.rel (0) target = $region9
    $region8: #{tpu_custom_call.1} parent=1 // pred_region
      _
    $region9: #{tpu_custom_call.1} parent=1 // pred_fallthru
      _
    // Predicated region
    $region10: #{tpu_custom_call.1} parent=1 // pred_check
      _
    $region11: #{tpu_custom_call.1} parent=1 // pred_check_branch
      %24 = sbr.rel (0) target = $region13
    $region12: #{tpu_custom_call.1} parent=1 // pred_region
      _
    $region13: #{tpu_custom_call.1} parent=1 // pred_fallthru
      _
    // Predicated region
    $region14: #{tpu_custom_call.1} parent=1 // pred_check
      _
    $region15: #{tpu_custom_call.1} parent=1 // pred_check_branch
      %26 = sbr.rel (0) target = $region17
    $region16: #{tpu_custom_call.1} parent=1 // pred_region
      _
    $region17: #{tpu_custom_call.1} parent=1 // pred_fallthru
      _
    // Predicated region
    $region18: #{tpu_custom_call.1} parent=1 // pred_check
      _
    $region19: #{tpu_custom_call.1} parent=1 // pred_check_branch
      %28 = sbr.rel (0) target = $region21
    $region20: #{tpu_custom_call.1} parent=1 // pred_region
      _
    $region21: #{tpu_custom_call.1} parent=1 // pred_fallthru
      _
    // Predicated region
    $region22: #{tpu_custom_call.1} parent=1 // pred_check
      _
    $region23: #{tpu_custom_call.1} parent=1 // pred_check_branch
      %30 = sbr.rel (0) target = $region25
    $region24: #{tpu_custom_call.1} parent=1 // pred_region
      _
    $region25: #{tpu_custom_call.1} parent=1 // pred_fallthru
      _
    // Predicated region
    $region26: #{tpu_custom_call.1} parent=1 // pred_check
      _
    $region27: #{tpu_custom_call.1} parent=1 // pred_check_branch
      %32 = sbr.rel (0) target = $region29
    $region28: #{tpu_custom_call.1} parent=1 // pred_region
      _
    $region29: #{tpu_custom_call.1} parent=1 // pred_fallthru
      _
    // Predicated region
    $region30: #{tpu_custom_call.1} parent=1 // pred_check
      _
    $region31: #{tpu_custom_call.1} parent=1 // pred_check_branch
      %34 = sbr.rel (0) target = $region33
    $region32: #{tpu_custom_call.1} parent=1 // pred_region
      _
    $region33: #{tpu_custom_call.1} parent=1 // pred_fallthru
      _
    // Predicated region
    $region34: #{tpu_custom_call.1} parent=1 // pred_check
      _
    $region35: #{tpu_custom_call.1} parent=1 // pred_check_branch
      %36 = sbr.rel (0) target = $region37
    $region36: #{tpu_custom_call.1} parent=1 // pred_region
      _
    $region37: #{tpu_custom_call.1} parent=1 // pred_fallthru
      _
    // Predicated region
    $region38: #{tpu_custom_call.1} parent=1 // pred_check
      _
    $region39: #{tpu_custom_call.1} parent=1 // pred_check_branch
      %38 = sbr.rel (0) target = $region41
    $region40: #{tpu_custom_call.1} parent=1 // pred_region
      _
    $region41: #{tpu_custom_call.1} parent=1 // pred_fallthru
      _
    // Predicated region
    $region42: #{tpu_custom_call.1} parent=1 // pred_check
      _
    $region43: #{tpu_custom_call.1} parent=1 // pred_check_branch
      %40 = sbr.rel (0) target = $region45
    $region44: #{tpu_custom_call.1} parent=1 // pred_region
      _
    $region45: #{tpu_custom_call.1} parent=1 // pred_fallthru
      _
    %v41 = vld [vmem:[%s0] sm:$0x1]
    %v42 = vld [vmem:[%s1] sm:$0xff]
    %v43 = vld [vmem:[%s1 + $0x8] sm:$0xff]
    %v44 = vld [vmem:[%s1 + $0x10] sm:$0xf]
    %46 = vset.pattern.permute.xlu0 0
    %47 = vperm.xlu0 %46, %v42
    %v48 = vpop.permute.xlu0 %47
    %51 = vset.pattern.permute.xlu0 0
    %52 = vperm.xlu0 %51, %v43
    %v53 = vpop.permute.xlu0 %52
    %56 = vset.pattern.permute.xlu0 0
    %57 = vperm.xlu0 %56, %v44
    %v58 = vpop.permute.xlu0 %57
    %v61 = vlaneseq
    %v62 = vshrl.u32 %v61, 7
    %v63 = vsub.s32 0, %v62
    %v64 = vrot.slane %v41, %v63
    %v66 = vmul.f32 %v48, %v64
    %v67 = vmul.f32 %v53, %v64
    %v68 = vmul.f32 %v58, %v64
    %v69 = vld [vmem:[%s2] sm:$0xff]
    %v70 = vld [vmem:[%s2 + $0x8] sm:$0xff]
    %v71 = vld [vmem:[%s2 + $0x10] sm:$0xf]
    %73 = vset.pattern.permute.xlu0 0
    %74 = vperm.xlu0 %73, %v69
    %v75 = vpop.permute.xlu0 %74
    %78 = vset.pattern.permute.xlu0 0
    %79 = vperm.xlu0 %78, %v70
    %v80 = vpop.permute.xlu0 %79
    %83 = vset.pattern.permute.xlu0 0
    %84 = vperm.xlu0 %83, %v71
    %v85 = vpop.permute.xlu0 %84
    %v87 = vadd.f32 %v66, %v75
    %v88 = vadd.f32 %v67, %v80
    %v89 = vadd.f32 %v68, %v85
    %v90 = vmax.f32 %v87, 0.0
    %v91 = vmax.f32 %v88, 0.0
    %v92 = vmax.f32 %v89, 0.0
    %v93 = vld [vmem:[%s3] sm:$0xff]
    %v94 = vld [vmem:[%s3 + $0x8] sm:$0xff]
    %v95 = vld [vmem:[%s3 + $0x10] sm:$0xff]
    %v96 = vld [vmem:[%s3 + $0x18] sm:$0xff]
    %v97 = vld [vmem:[%s3 + $0x20] sm:$0xff]
    %v98 = vld [vmem:[%s3 + $0x28] sm:$0xff]
    %v99 = vld [vmem:[%s3 + $0x30] sm:$0xff]
    %v100 = vld [vmem:[%s3 + $0x38] sm:$0xff]
    %v101 = vld [vmem:[%s4] sm:$0xff]
    %v102 = vld [vmem:[%s4 + $0x8] sm:$0xff]
    %v103 = vld [vmem:[%s4 + $0x10] sm:$0xff]
    %v104 = vld [vmem:[%s4 + $0x18] sm:$0xff]
    %v105 = vld [vmem:[%s4 + $0x20] sm:$0xff]
    %v106 = vld [vmem:[%s4 + $0x28] sm:$0xff]
    %v107 = vld [vmem:[%s4 + $0x30] sm:$0xff]
    %v108 = vld [vmem:[%s4 + $0x38] sm:$0xff]
    %110 = vset.pattern.permute.xlu0 0
    %111 = vperm.xlu0 %110, %v101
    %v112 = vpop.permute.xlu0 %111
    %115 = vset.pattern.permute.xlu0 0
    %116 = vperm.xlu0 %115, %v102
    %v117 = vpop.permute.xlu0 %116
    %120 = vset.pattern.permute.xlu0 0
    %121 = vperm.xlu0 %120, %v103
    %v122 = vpop.permute.xlu0 %121
    %125 = vset.pattern.permute.xlu0 0
    %126 = vperm.xlu0 %125, %v104
    %v127 = vpop.permute.xlu0 %126
    %130 = vset.pattern.permute.xlu0 0
    %131 = vperm.xlu0 %130, %v105
    %v132 = vpop.permute.xlu0 %131
    %135 = vset.pattern.permute.xlu0 0
    %136 = vperm.xlu0 %135, %v106
    %v137 = vpop.permute.xlu0 %136
    %140 = vset.pattern.permute.xlu0 0
    %141 = vperm.xlu0 %140, %v107
    %v142 = vpop.permute.xlu0 %141
    %145 = vset.pattern.permute.xlu0 0
    %146 = vperm.xlu0 %145, %v108
    %v147 = vpop.permute.xlu0 %146
    %vm149 = vcmask 162816
    %v151 = vsel %vm149, %v93, 0
    %v154 = vsel %vm149, %v94, 0
    %v157 = vsel %vm149, %v95, 0
    %v160 = vsel %vm149, %v96, 0
    %v163 = vsel %vm149, %v97, 0
    %v166 = vsel %vm149, %v98, 0
    %v169 = vsel %vm149, %v99, 0
    %v172 = vsel %vm149, %v100, 0
    %vm174 = vcmask 1043456
    %v176 = vsel %vm174, %v92, 0
    %178 = vmatprep.subr.mxu0 0.0
    %179 = vmatpush1.msra.mxu0 %v90
    %180 = vmatprep.subr.mxu0 0.0
    %181 = vmatpush1.msra.mxu0 %v91
    %182 = vmatprep.subr.mxu0 0.0
    %183 = vmatpush1.msra.mxu0 %v176
    %184 = vmatprep.subr.mxu0 0.0
    %185 = vmatpush1.msra.mxu0 0.0
    %186 = vmatprep.subr.mxu0 0.0
    %187 = vmatpush1.msra.mxu0 0.0
    %188 = vmatprep.subr.mxu0 0.0
    %189 = vmatpush1.msra.mxu0 0.0
    %190 = vmatprep.subr.mxu0 0.0
    %191 = vmatpush1.msra.mxu0 0.0
    %192 = vmatprep.subr.mxu0 0.0
    %193 = vmatpush1.msra.mxu0 0.0
    %194 = vmatprep.subr.mxu0 0.0
    %195 = vmatpush1.msra.mxu0 0.0
    %196 = vmatprep.subr.mxu0 0.0
    %197 = vmatpush1.msra.mxu0 0.0
    %198 = vmatprep.subr.mxu0 0.0
    %199 = vmatpush1.msra.mxu0 0.0
    %200 = vmatprep.subr.mxu0 0.0
    %201 = vmatpush1.msra.mxu0 0.0
    %202 = vmatprep.subr.mxu0 0.0
    %203 = vmatpush1.msra.mxu0 0.0
    %204 = vmatprep.subr.mxu0 0.0
    %205 = vmatpush1.msra.mxu0 0.0
    %206 = vmatprep.subr.mxu0 0.0
    %207 = vmatpush1.msra.mxu0 0.0
    %208 = vmatprep.subr.mxu0 0.0
    %209 = vmatpush1.msra.mxu0 0.0
    %210 = vmatprep.subr.mxu0 0.0
    %211 = vmatpush1.msra.mxu0 0.0
    %212 = vmatprep.subr.mxu0 0.0
    %213 = vmatpush1.msra.mxu0 0.0
    %214 = vmatprep.subr.mxu0 0.0
    %215 = vmatpush1.msra.mxu0 0.0
    %216 = vmatprep.subr.mxu0 0.0
    %217 = vmatpush1.msra.mxu0 0.0
    %218 = vmatprep.subr.mxu0 0.0
    %219 = vmatpush1.msra.mxu0 0.0
    %220 = vmatprep.subr.mxu0 0.0
    %221 = vmatpush1.msra.mxu0 0.0
    %222 = vmatprep.subr.mxu0 0.0
    %223 = vmatpush1.msra.mxu0 0.0
    %224 = vmatprep.subr.mxu0 0.0
    %225 = vmatpush1.msra.mxu0 0.0
    %226 = vmatprep.subr.mxu0 0.0
    %227 = vmatpush1.msra.mxu0 0.0
    %228 = vmatprep.subr.mxu0 0.0
    %229 = vmatpush1.msra.mxu0 0.0
    %230 = vmatprep.subr.mxu0 0.0
    %231 = vmatpush1.msra.mxu0 0.0
    %232 = vmatprep.subr.mxu0 0.0
    %233 = vmatpush1.msra.mxu0 0.0
    %234 = vmatprep.subr.mxu0 0.0
    %235 = vmatpush1.msra.mxu0 0.0
    %236 = vmatprep.subr.mxu0 0.0
    %237 = vmatpush1.msra.mxu0 0.0
    %238 = vmatprep.subr.mxu0 0.0
    %239 = vmatpush1.msra.mxu0 0.0
    %240 = vmatprep.subr.mxu0 0.0
    %241 = vmatpush1.msra.mxu0 0.0
    %242 = vmatprep.mubr.f32.mxu0 0.0
    %243 = vmatmul.mubr.f32.gmra.mrb[0].mxu0 %v151
    %v244 = vpop.f32.mrb[0].mxu0
    %v245 = vadd.f32 %v112, %v244
    %v246 = vpop.f32.mrb[0].mxu0
    %247 = vmatprep.mubr.f32.mxu0 0.0
    %248 = vmatmul.mubr.f32.gmra.mrb[0].mxu0 %v154
    %v249 = vpop.f32.mrb[0].mxu0
    %v250 = vadd.f32 %v117, %v249
    %v251 = vpop.f32.mrb[0].mxu0
    %252 = vmatprep.mubr.f32.mxu0 0.0
    %253 = vmatmul.mubr.f32.gmra.mrb[0].mxu0 %v157
    %v254 = vpop.f32.mrb[0].mxu0
    %v255 = vadd.f32 %v122, %v254
    %v256 = vpop.f32.mrb[0].mxu0
    %257 = vmatprep.mubr.f32.mxu0 0.0
    %258 = vmatmul.mubr.f32.gmra.mrb[0].mxu0 %v160
    %v259 = vpop.f32.mrb[0].mxu0
    %v260 = vadd.f32 %v127, %v259
    %v261 = vpop.f32.mrb[0].mxu0
    %262 = vmatprep.mubr.f32.mxu0 0.0
    %263 = vmatmul.mubr.f32.gmra.mrb[0].mxu0 %v163
    %v264 = vpop.f32.mrb[0].mxu0
    %v265 = vadd.f32 %v132, %v264
    %v266 = vpop.f32.mrb[0].mxu0
    %267 = vmatprep.mubr.f32.mxu0 0.0
    %268 = vmatmul.mubr.f32.gmra.mrb[0].mxu0 %v166
    %v269 = vpop.f32.mrb[0].mxu0
    %v270 = vadd.f32 %v137, %v269
    %v271 = vpop.f32.mrb[0].mxu0
    %272 = vmatprep.mubr.f32.mxu0 0.0
    %273 = vmatmul.mubr.f32.gmra.mrb[0].mxu0 %v169
    %v274 = vpop.f32.mrb[0].mxu0
    %v275 = vadd.f32 %v142, %v274
    %v276 = vpop.f32.mrb[0].mxu0
    %277 = vmatprep.mubr.f32.mxu0 0.0
    %278 = vmatmul.mubr.f32.gmra.mrb[0].mxu0 %v172
    %v279 = vpop.f32.mrb[0].mxu0
    %v280 = vadd.f32 %v147, %v279
    %v281 = vpop.f32.mrb[0].mxu0
    %282 = vdwg.mxu0
    %v283 = vmax.f32 %v245, 0.0
    %v284 = vmax.f32 %v250, 0.0
    %v285 = vmax.f32 %v255, 0.0
    %v286 = vmax.f32 %v260, 0.0
    %v287 = vmax.f32 %v265, 0.0
    %v288 = vmax.f32 %v270, 0.0
    %v289 = vmax.f32 %v275, 0.0
    %v290 = vmax.f32 %v280, 0.0
    %v291 = vld [vmem:[%s5] sm:$0xff]
    %v292 = vld [vmem:[%s5 + $0x8] sm:$0xff]
    %v293 = vld [vmem:[%s5 + $0x10] sm:$0xff]
    %v294 = vld [vmem:[%s5 + $0x18] sm:$0xff]
    %v295 = vld [vmem:[%s5 + $0x20] sm:$0xff]
    %v296 = vld [vmem:[%s5 + $0x28] sm:$0xff]
    %v297 = vld [vmem:[%s5 + $0x30] sm:$0xff]
    %v298 = vld [vmem:[%s5 + $0x38] sm:$0xff]
    %v299 = vld [vmem:[%s5 + $0x40] sm:$0xff]
    %v300 = vld [vmem:[%s5 + $0x48] sm:$0xff]
    %v301 = vld [vmem:[%s5 + $0x50] sm:$0xff]
    %v302 = vld [vmem:[%s5 + $0x58] sm:$0xff]
    %v303 = vld [vmem:[%s5 + $0x60] sm:$0xff]
    %v304 = vld [vmem:[%s5 + $0x68] sm:$0xff]
    %v305 = vld [vmem:[%s5 + $0x70] sm:$0xff]
    %v306 = vld [vmem:[%s5 + $0x78] sm:$0xff]
    %v307 = vld [vmem:[%s6] sm:$0xff]
    %v308 = vld [vmem:[%s6 + $0x8] sm:$0xff]
    %v309 = vld [vmem:[%s6 + $0x10] sm:$0xff]
    %v310 = vld [vmem:[%s6 + $0x18] sm:$0xff]
    %v311 = vld [vmem:[%s6 + $0x20] sm:$0xff]
    %v312 = vld [vmem:[%s6 + $0x28] sm:$0xff]
    %v313 = vld [vmem:[%s6 + $0x30] sm:$0xff]
    %v314 = vld [vmem:[%s6 + $0x38] sm:$0xff]
    %v315 = vld [vmem:[%s6 + $0x40] sm:$0xff]
    %v316 = vld [vmem:[%s6 + $0x48] sm:$0xff]
    %v317 = vld [vmem:[%s6 + $0x50] sm:$0xff]
    %v318 = vld [vmem:[%s6 + $0x58] sm:$0xff]
    %v319 = vld [vmem:[%s6 + $0x60] sm:$0xff]
    %v320 = vld [vmem:[%s6 + $0x68] sm:$0xff]
    %v321 = vld [vmem:[%s6 + $0x70] sm:$0xff]
    %v322 = vld [vmem:[%s6 + $0x78] sm:$0xff]
    %324 = vset.pattern.permute.xlu0 0
    %325 = vperm.xlu0 %324, %v307
    %v326 = vpop.permute.xlu0 %325
    %329 = vset.pattern.permute.xlu0 0
    %330 = vperm.xlu0 %329, %v308
    %v331 = vpop.permute.xlu0 %330
    %334 = vset.pattern.permute.xlu0 0
    %335 = vperm.xlu0 %334, %v309
    %v336 = vpop.permute.xlu0 %335
    %339 = vset.pattern.permute.xlu0 0
    %340 = vperm.xlu0 %339, %v310
    %v341 = vpop.permute.xlu0 %340
    %344 = vset.pattern.permute.xlu0 0
    %345 = vperm.xlu0 %344, %v311
    %v346 = vpop.permute.xlu0 %345
    %349 = vset.pattern.permute.xlu0 0
    %350 = vperm.xlu0 %349, %v312
    %v351 = vpop.permute.xlu0 %350
    %354 = vset.pattern.permute.xlu0 0
    %355 = vperm.xlu0 %354, %v313
    %v356 = vpop.permute.xlu0 %355
    %359 = vset.pattern.permute.xlu0 0
    %360 = vperm.xlu0 %359, %v314
    %v361 = vpop.permute.xlu0 %360
    %364 = vset.pattern.permute.xlu0 0
    %365 = vperm.xlu0 %364, %v315
    %v366 = vpop.permute.xlu0 %365
    %369 = vset.pattern.permute.xlu0 0
    %370 = vperm.xlu0 %369, %v316
    %v371 = vpop.permute.xlu0 %370
    %374 = vset.pattern.permute.xlu0 0
    %375 = vperm.xlu0 %374, %v317
    %v376 = vpop.permute.xlu0 %375
    %379 = vset.pattern.permute.xlu0 0
    %380 = vperm.xlu0 %379, %v318
    %v381 = vpop.permute.xlu0 %380
    %384 = vset.pattern.permute.xlu0 0
    %385 = vperm.xlu0 %384, %v319
    %v386 = vpop.permute.xlu0 %385
    %389 = vset.pattern.permute.xlu0 0
    %390 = vperm.xlu0 %389, %v320
    %v391 = vpop.permute.xlu0 %390
    %394 = vset.pattern.permute.xlu0 0
    %395 = vperm.xlu0 %394, %v321
    %v396 = vpop.permute.xlu0 %395
    %399 = vset.pattern.permute.xlu0 0
    %400 = vperm.xlu0 %399, %v322
    %v401 = vpop.permute.xlu0 %400
    %vm403 = vcmask 523264
    %v405 = vsel %vm403, %v291, 0
    %v408 = vsel %vm403, %v292, 0
    %v411 = vsel %vm403, %v293, 0
    %v414 = vsel %vm403, %v294, 0
    %v417 = vsel %vm403, %v295, 0
    %v420 = vsel %vm403, %v296, 0
    %v423 = vsel %vm403, %v297, 0
    %v426 = vsel %vm403, %v298, 0
    %v429 = vsel %vm403, %v299, 0
    %v432 = vsel %vm403, %v300, 0
    %v435 = vsel %vm403, %v301, 0
    %v438 = vsel %vm403, %v302, 0
    %v441 = vsel %vm403, %v303, 0
    %v444 = vsel %vm403, %v304, 0
    %v447 = vsel %vm403, %v305, 0
    %v450 = vsel %vm403, %v306, 0
    %452 = vmatprep.subr.mxu0 0.0
    %453 = vmatpush1.msra.mxu0 %v283
    %454 = vmatprep.subr.mxu0 0.0
    %455 = vmatpush1.msra.mxu0 %v284
    %456 = vmatprep.subr.mxu0 0.0
    %457 = vmatpush1.msra.mxu0 %v285
    %458 = vmatprep.subr.mxu0 0.0
    %459 = vmatpush1.msra.mxu0 %v286
    %460 = vmatprep.subr.mxu0 0.0
    %461 = vmatpush1.msra.mxu0 %v287
    %462 = vmatprep.subr.mxu0 0.0
    %463 = vmatpush1.msra.mxu0 %v288
    %464 = vmatprep.subr.mxu0 0.0
    %465 = vmatpush1.msra.mxu0 %v289
    %466 = vmatprep.subr.mxu0 0.0
    %467 = vmatpush1.msra.mxu0 %v290
    %468 = vmatprep.subr.mxu0 0.0
    %469 = vmatpush1.msra.mxu0 0.0
    %470 = vmatprep.subr.mxu0 0.0
    %471 = vmatpush1.msra.mxu0 0.0
    %472 = vmatprep.subr.mxu0 0.0
    %473 = vmatpush1.msra.mxu0 0.0
    %474 = vmatprep.subr.mxu0 0.0
    %475 = vmatpush1.msra.mxu0 0.0
    %476 = vmatprep.subr.mxu0 0.0
    %477 = vmatpush1.msra.mxu0 0.0
    %478 = vmatprep.subr.mxu0 0.0
    %479 = vmatpush1.msra.mxu0 0.0
    %480 = vmatprep.subr.mxu0 0.0
    %481 = vmatpush1.msra.mxu0 0.0
    %482 = vmatprep.subr.mxu0 0.0
    %483 = vmatpush1.msra.mxu0 0.0
    %484 = vmatprep.subr.mxu0 0.0
    %485 = vmatpush1.msra.mxu0 0.0
    %486 = vmatprep.subr.mxu0 0.0
    %487 = vmatpush1.msra.mxu0 0.0
    %488 = vmatprep.subr.mxu0 0.0
    %489 = vmatpush1.msra.mxu0 0.0
    %490 = vmatprep.subr.mxu0 0.0
    %491 = vmatpush1.msra.mxu0 0.0
    %492 = vmatprep.subr.mxu0 0.0
    %493 = vmatpush1.msra.mxu0 0.0
    %494 = vmatprep.subr.mxu0 0.0
    %495 = vmatpush1.msra.mxu0 0.0
    %496 = vmatprep.subr.mxu0 0.0
    %497 = vmatpush1.msra.mxu0 0.0
    %498 = vmatprep.subr.mxu0 0.0
    %499 = vmatpush1.msra.mxu0 0.0
    %500 = vmatprep.subr.mxu0 0.0
    %501 = vmatpush1.msra.mxu0 0.0
    %502 = vmatprep.subr.mxu0 0.0
    %503 = vmatpush1.msra.mxu0 0.0
    %504 = vmatprep.subr.mxu0 0.0
    %505 = vmatpush1.msra.mxu0 0.0
    %506 = vmatprep.subr.mxu0 0.0
    %507 = vmatpush1.msra.mxu0 0.0
    %508 = vmatprep.subr.mxu0 0.0
    %509 = vmatpush1.msra.mxu0 0.0
    %510 = vmatprep.subr.mxu0 0.0
    %511 = vmatpush1.msra.mxu0 0.0
    %512 = vmatprep.subr.mxu0 0.0
    %513 = vmatpush1.msra.mxu0 0.0
    %514 = vmatprep.subr.mxu0 0.0
    %515 = vmatpush1.msra.mxu0 0.0
    %516 = vmatprep.mubr.f32.mxu0 0.0
    %517 = vmatmul.mubr.f32.gmra.mrb[0].mxu0 %v405
    %v518 = vpop.f32.mrb[0].mxu0
    %v519 = vadd.f32 %v326, %v518
    %v520 = vpop.f32.mrb[0].mxu0
    %521 = vmatprep.mubr.f32.mxu0 0.0
    %522 = vmatmul.mubr.f32.gmra.mrb[0].mxu0 %v408
    %v523 = vpop.f32.mrb[0].mxu0
    %v524 = vadd.f32 %v331, %v523
    %v525 = vpop.f32.mrb[0].mxu0
    %526 = vmatprep.mubr.f32.mxu0 0.0
    %527 = vmatmul.mubr.f32.gmra.mrb[0].mxu0 %v411
    %v528 = vpop.f32.mrb[0].mxu0
    %v529 = vadd.f32 %v336, %v528
    %v530 = vpop.f32.mrb[0].mxu0
    %531 = vmatprep.mubr.f32.mxu0 0.0
    %532 = vmatmul.mubr.f32.gmra.mrb[0].mxu0 %v414
    %v533 = vpop.f32.mrb[0].mxu0
    %v534 = vadd.f32 %v341, %v533
    %v535 = vpop.f32.mrb[0].mxu0
    %536 = vmatprep.mubr.f32.mxu0 0.0
    %537 = vmatmul.mubr.f32.gmra.mrb[0].mxu0 %v417
    %v538 = vpop.f32.mrb[0].mxu0
    %v539 = vadd.f32 %v346, %v538
    %v540 = vpop.f32.mrb[0].mxu0
    %541 = vmatprep.mubr.f32.mxu0 0.0
    %542 = vmatmul.mubr.f32.gmra.mrb[0].mxu0 %v420
    %v543 = vpop.f32.mrb[0].mxu0
    %v544 = vadd.f32 %v351, %v543
    %v545 = vpop.f32.mrb[0].mxu0
    %546 = vmatprep.mubr.f32.mxu0 0.0
    %547 = vmatmul.mubr.f32.gmra.mrb[0].mxu0 %v423
    %v548 = vpop.f32.mrb[0].mxu0
    %v549 = vadd.f32 %v356, %v548
    %v550 = vpop.f32.mrb[0].mxu0
    %551 = vmatprep.mubr.f32.mxu0 0.0
    %552 = vmatmul.mubr.f32.gmra.mrb[0].mxu0 %v426
    %v553 = vpop.f32.mrb[0].mxu0
    %v554 = vadd.f32 %v361, %v553
    %v555 = vpop.f32.mrb[0].mxu0
    %556 = vmatprep.mubr.f32.mxu0 0.0
    %557 = vmatmul.mubr.f32.gmra.mrb[0].mxu0 %v429
    %v558 = vpop.f32.mrb[0].mxu0
    %v559 = vadd.f32 %v366, %v558
    %v560 = vpop.f32.mrb[0].mxu0
    %561 = vmatprep.mubr.f32.mxu0 0.0
    %562 = vmatmul.mubr.f32.gmra.mrb[0].mxu0 %v432
    %v563 = vpop.f32.mrb[0].mxu0
    %v564 = vadd.f32 %v371, %v563
    %v565 = vpop.f32.mrb[0].mxu0
    %566 = vmatprep.mubr.f32.mxu0 0.0
    %567 = vmatmul.mubr.f32.gmra.mrb[0].mxu0 %v435
    %v568 = vpop.f32.mrb[0].mxu0
    %v569 = vadd.f32 %v376, %v568
    %v570 = vpop.f32.mrb[0].mxu0
    %571 = vmatprep.mubr.f32.mxu0 0.0
    %572 = vmatmul.mubr.f32.gmra.mrb[0].mxu0 %v438
    %v573 = vpop.f32.mrb[0].mxu0
    %v574 = vadd.f32 %v381, %v573
    %v575 = vpop.f32.mrb[0].mxu0
    %576 = vmatprep.mubr.f32.mxu0 0.0
    %577 = vmatmul.mubr.f32.gmra.mrb[0].mxu0 %v441
    %v578 = vpop.f32.mrb[0].mxu0
    %v579 = vadd.f32 %v386, %v578
    %v580 = vpop.f32.mrb[0].mxu0
    %581 = vmatprep.mubr.f32.mxu0 0.0
    %582 = vmatmul.mubr.f32.gmra.mrb[0].mxu0 %v444
    %v583 = vpop.f32.mrb[0].mxu0
    %v584 = vadd.f32 %v391, %v583
    %v585 = vpop.f32.mrb[0].mxu0
    %586 = vmatprep.mubr.f32.mxu0 0.0
    %587 = vmatmul.mubr.f32.gmra.mrb[0].mxu0 %v447
    %v588 = vpop.f32.mrb[0].mxu0
    %v589 = vadd.f32 %v396, %v588
    %v590 = vpop.f32.mrb[0].mxu0
    %591 = vmatprep.mubr.f32.mxu0 0.0
    %592 = vmatmul.mubr.f32.gmra.mrb[0].mxu0 %v450
    %v593 = vpop.f32.mrb[0].mxu0
    %v594 = vadd.f32 %v401, %v593
    %v595 = vpop.f32.mrb[0].mxu0
    %596 = vdwg.mxu0
    %v597 = vmax.f32 %v519, 0.0
    %v598 = vmax.f32 %v524, 0.0
    %v599 = vmax.f32 %v529, 0.0
    %v600 = vmax.f32 %v534, 0.0
    %v601 = vmax.f32 %v539, 0.0
    %v602 = vmax.f32 %v544, 0.0
    %v603 = vmax.f32 %v549, 0.0
    %v604 = vmax.f32 %v554, 0.0
    %v605 = vmax.f32 %v559, 0.0
    %v606 = vmax.f32 %v564, 0.0
    %v607 = vmax.f32 %v569, 0.0
    %v608 = vmax.f32 %v574, 0.0
    %v609 = vmax.f32 %v579, 0.0
    %v610 = vmax.f32 %v584, 0.0
    %v611 = vmax.f32 %v589, 0.0
    %v612 = vmax.f32 %v594, 0.0
    %v613 = vld [vmem:[%s7] sm:$0xff]
    %v614 = vld [vmem:[%s7 + $0x8] sm:$0xff]
    %v615 = vld [vmem:[%s7 + $0x10] sm:$0xff]
    %v616 = vld [vmem:[%s7 + $0x18] sm:$0xff]
    %v617 = vld [vmem:[%s7 + $0x20] sm:$0xff]
    %v618 = vld [vmem:[%s7 + $0x28] sm:$0xff]
    %v619 = vld [vmem:[%s7 + $0x30] sm:$0xff]
    %v620 = vld [vmem:[%s7 + $0x38] sm:$0xff]
    %v621 = vld [vmem:[%s8] sm:$0xff]
    %v622 = vld [vmem:[%s8 + $0x8] sm:$0xff]
    %v623 = vld [vmem:[%s8 + $0x10] sm:$0xff]
    %v624 = vld [vmem:[%s8 + $0x18] sm:$0xff]
    %v625 = vld [vmem:[%s8 + $0x20] sm:$0xff]
    %v626 = vld [vmem:[%s8 + $0x28] sm:$0xff]
    %v627 = vld [vmem:[%s8 + $0x30] sm:$0xff]
    %v628 = vld [vmem:[%s8 + $0x38] sm:$0xff]
    %630 = vset.pattern.permute.xlu0 0
    %631 = vperm.xlu0 %630, %v621
    %v632 = vpop.permute.xlu0 %631
    %635 = vset.pattern.permute.xlu0 0
    %636 = vperm.xlu0 %635, %v622
    %v637 = vpop.permute.xlu0 %636
    %640 = vset.pattern.permute.xlu0 0
    %641 = vperm.xlu0 %640, %v623
    %v642 = vpop.permute.xlu0 %641
    %645 = vset.pattern.permute.xlu0 0
    %646 = vperm.xlu0 %645, %v624
    %v647 = vpop.permute.xlu0 %646
    %650 = vset.pattern.permute.xlu0 0
    %651 = vperm.xlu0 %650, %v625
    %v652 = vpop.permute.xlu0 %651
    %655 = vset.pattern.permute.xlu0 0
    %656 = vperm.xlu0 %655, %v626
    %v657 = vpop.permute.xlu0 %656
    %660 = vset.pattern.permute.xlu0 0
    %661 = vperm.xlu0 %660, %v627
    %v662 = vpop.permute.xlu0 %661
    %665 = vset.pattern.permute.xlu0 0
    %666 = vperm.xlu0 %665, %v628
    %v667 = vpop.permute.xlu0 %666
    %669 = vmatprep.subr.mxu0 0.0
    %670 = vmatpush1.msra.mxu0 %v597
    %671 = vmatprep.subr.mxu0 0.0
    %672 = vmatpush1.msra.mxu0 %v598
    %673 = vmatprep.subr.mxu0 0.0
    %674 = vmatpush1.msra.mxu0 %v599
    %675 = vmatprep.subr.mxu0 0.0
    %676 = vmatpush1.msra.mxu0 %v600
    %677 = vmatprep.subr.mxu0 0.0
    %678 = vmatpush1.msra.mxu0 %v601
    %679 = vmatprep.subr.mxu0 0.0
    %680 = vmatpush1.msra.mxu0 %v602
    %681 = vmatprep.subr.mxu0 0.0
    %682 = vmatpush1.msra.mxu0 %v603
    %683 = vmatprep.subr.mxu0 0.0
    %684 = vmatpush1.msra.mxu0 %v604
    %685 = vmatprep.subr.mxu0 0.0
    %686 = vmatpush1.msra.mxu0 %v605
    %687 = vmatprep.subr.mxu0 0.0
    %688 = vmatpush1.msra.mxu0 %v606
    %689 = vmatprep.subr.mxu0 0.0
    %690 = vmatpush1.msra.mxu0 %v607
    %691 = vmatprep.subr.mxu0 0.0
    %692 = vmatpush1.msra.mxu0 %v608
    %693 = vmatprep.subr.mxu0 0.0
    %694 = vmatpush1.msra.mxu0 %v609
    %695 = vmatprep.subr.mxu0 0.0
    %696 = vmatpush1.msra.mxu0 %v610
    %697 = vmatprep.subr.mxu0 0.0
    %698 = vmatpush1.msra.mxu0 %v611
    %699 = vmatprep.subr.mxu0 0.0
    %700 = vmatpush1.msra.mxu0 %v612
    %701 = vmatprep.subr.mxu0 0.0
    %702 = vmatpush1.msra.mxu0 0.0
    %703 = vmatprep.subr.mxu0 0.0
    %704 = vmatpush1.msra.mxu0 0.0
    %705 = vmatprep.subr.mxu0 0.0
    %706 = vmatpush1.msra.mxu0 0.0
    %707 = vmatprep.subr.mxu0 0.0
    %708 = vmatpush1.msra.mxu0 0.0
    %709 = vmatprep.subr.mxu0 0.0
    %710 = vmatpush1.msra.mxu0 0.0
    %711 = vmatprep.subr.mxu0 0.0
    %712 = vmatpush1.msra.mxu0 0.0
    %713 = vmatprep.subr.mxu0 0.0
    %714 = vmatpush1.msra.mxu0 0.0
    %715 = vmatprep.subr.mxu0 0.0
    %716 = vmatpush1.msra.mxu0 0.0
    %717 = vmatprep.subr.mxu0 0.0
    %718 = vmatpush1.msra.mxu0 0.0
    %719 = vmatprep.subr.mxu0 0.0
    %720 = vmatpush1.msra.mxu0 0.0
    %721 = vmatprep.subr.mxu0 0.0
    %722 = vmatpush1.msra.mxu0 0.0
    %723 = vmatprep.subr.mxu0 0.0
    %724 = vmatpush1.msra.mxu0 0.0
    %725 = vmatprep.subr.mxu0 0.0
    %726 = vmatpush1.msra.mxu0 0.0
    %727 = vmatprep.subr.mxu0 0.0
    %728 = vmatpush1.msra.mxu0 0.0
    %729 = vmatprep.subr.mxu0 0.0
    %730 = vmatpush1.msra.mxu0 0.0
    %731 = vmatprep.subr.mxu0 0.0
    %732 = vmatpush1.msra.mxu0 0.0
    %733 = vmatprep.mubr.f32.mxu0 0.0
    %734 = vmatmul.mubr.f32.gmra.mrb[0].mxu0 %v613
    %v735 = vpop.f32.mrb[0].mxu0
    %v736 = vadd.f32 %v632, %v735
    %v737 = vpop.f32.mrb[0].mxu0
    %738 = vmatprep.mubr.f32.mxu0 0.0
    %739 = vmatmul.mubr.f32.gmra.mrb[0].mxu0 %v614
    %v740 = vpop.f32.mrb[0].mxu0
    %v741 = vadd.f32 %v637, %v740
    %v742 = vpop.f32.mrb[0].mxu0
    %743 = vmatprep.mubr.f32.mxu0 0.0
    %744 = vmatmul.mubr.f32.gmra.mrb[0].mxu0 %v615
    %v745 = vpop.f32.mrb[0].mxu0
    %v746 = vadd.f32 %v642, %v745
    %v747 = vpop.f32.mrb[0].mxu0
    %748 = vmatprep.mubr.f32.mxu0 0.0
    %749 = vmatmul.mubr.f32.gmra.mrb[0].mxu0 %v616
    %v750 = vpop.f32.mrb[0].mxu0
    %v751 = vadd.f32 %v647, %v750
    %v752 = vpop.f32.mrb[0].mxu0
    %753 = vmatprep.mubr.f32.mxu0 0.0
    %754 = vmatmul.mubr.f32.gmra.mrb[0].mxu0 %v617
    %v755 = vpop.f32.mrb[0].mxu0
    %v756 = vadd.f32 %v652, %v755
    %v757 = vpop.f32.mrb[0].mxu0
    %758 = vmatprep.mubr.f32.mxu0 0.0
    %759 = vmatmul.mubr.f32.gmra.mrb[0].mxu0 %v618
    %v760 = vpop.f32.mrb[0].mxu0
    %v761 = vadd.f32 %v657, %v760
    %v762 = vpop.f32.mrb[0].mxu0
    %763 = vmatprep.mubr.f32.mxu0 0.0
    %764 = vmatmul.mubr.f32.gmra.mrb[0].mxu0 %v619
    %v765 = vpop.f32.mrb[0].mxu0
    %v766 = vadd.f32 %v662, %v765
    %v767 = vpop.f32.mrb[0].mxu0
    %768 = vmatprep.mubr.f32.mxu0 0.0
    %769 = vmatmul.mubr.f32.gmra.mrb[0].mxu0 %v620
    %v770 = vpop.f32.mrb[0].mxu0
    %v771 = vadd.f32 %v667, %v770
    %v772 = vpop.f32.mrb[0].mxu0
    %773 = vdwg.mxu0
    %v774 = vmax.f32 %v736, 0.0
    %v775 = vmax.f32 %v741, 0.0
    %v776 = vmax.f32 %v746, 0.0
    %v777 = vmax.f32 %v751, 0.0
    %v778 = vmax.f32 %v756, 0.0
    %v779 = vmax.f32 %v761, 0.0
    %v780 = vmax.f32 %v766, 0.0
    %v781 = vmax.f32 %v771, 0.0
    %v782 = vld [vmem:[%s9] sm:$0xff]
    %v783 = vld [vmem:[%s9 + $0x8] sm:$0xff]
    %v784 = vld [vmem:[%s9 + $0x10] sm:$0xff]
    %v785 = vld [vmem:[%s9 + $0x18] sm:$0xff]
    %v786 = vld [vmem:[%s9 + $0x20] sm:$0xff]
    %v787 = vld [vmem:[%s9 + $0x28] sm:$0xff]
    %v788 = vld [vmem:[%s9 + $0x30] sm:$0xff]
    %v789 = vld [vmem:[%s9 + $0x38] sm:$0xff]
    %791 = vset.pattern.permute.xlu0 0
    %792 = vperm.xlu0 %791, %v782
    %v793 = vpop.permute.xlu0 %792
    %796 = vset.pattern.permute.xlu0 0
    %797 = vperm.xlu0 %796, %v783
    %v798 = vpop.permute.xlu0 %797
    %801 = vset.pattern.permute.xlu0 0
    %802 = vperm.xlu0 %801, %v784
    %v803 = vpop.permute.xlu0 %802
    %806 = vset.pattern.permute.xlu0 0
    %807 = vperm.xlu0 %806, %v785
    %v808 = vpop.permute.xlu0 %807
    %811 = vset.pattern.permute.xlu0 0
    %812 = vperm.xlu0 %811, %v786
    %v813 = vpop.permute.xlu0 %812
    %816 = vset.pattern.permute.xlu0 0
    %817 = vperm.xlu0 %816, %v787
    %v818 = vpop.permute.xlu0 %817
    %821 = vset.pattern.permute.xlu0 0
    %822 = vperm.xlu0 %821, %v788
    %v823 = vpop.permute.xlu0 %822
    %826 = vset.pattern.permute.xlu0 0
    %827 = vperm.xlu0 %826, %v789
    %v828 = vpop.permute.xlu0 %827
    %v830 = vmul.f32 %v793, %v774
    %v831 = vmul.f32 %v798, %v775
    %v832 = vmul.f32 %v803, %v776
    %v833 = vmul.f32 %v808, %v777
    %v834 = vmul.f32 %v813, %v778
    %v835 = vmul.f32 %v818, %v779
    %v836 = vmul.f32 %v823, %v780
    %v837 = vmul.f32 %v828, %v781
    %v838 = vadd.f32 %v830, %v831
    %v839 = vadd.f32 %v838, %v832
    %v840 = vadd.f32 %v839, %v833
    %v841 = vadd.f32 %v840, %v834
    %v842 = vadd.f32 %v841, %v835
    %v843 = vadd.f32 %v842, %v836
    %v844 = vadd.f32 %v843, %v837
    %v845 = vrot.slane %v844, 4
    %v846 = vadd.f32 %v844, %v845
    %v847 = vrot.slane %v846, 2
    %v848 = vadd.f32 %v846, %v847
    %v849 = vrot.slane %v848, 1
    %v850 = vadd.f32 %v848, %v849
    %v851 = vld [vmem:[#allocation2] sm:$0x1]
    %853 = vset.pattern.permute.xlu0 0
    %854 = vperm.xlu0 %853, %v851
    %v855 = vpop.permute.xlu0 %854
    %v857 = vlaneseq
    %v858 = vshrl.u32 %v857, 7
    %v859 = vsub.s32 0, %v858
    %v860 = vrot.slane %v855, %v859
    %v861 = vadd.f32 %v850, %v860
    %862 = vst [vmem:[#allocation3] sm:$0x1] %v861
    // Predicated region
    $region46: #{tpu_custom_call.1} parent=1 // pred_check
      _
    $region47: #{tpu_custom_call.1} parent=1 // pred_check_branch
      %864 = sbr.rel (0) target = $region49
    $region48: #{tpu_custom_call.1} parent=1 // pred_region
      %s866 = ssub.s32 16, 16
      %867 = vsyncadd [#allocation4], %s866
      %s869 = sshll.u32 [#allocation3], 4
      %s870 = int_to_ptr.vmem [resolvable:$true] %s869
      %872 = dma.vmem_to_hbm [thread:$0]  %s870, 16, %s11, [#allocation4]
    $region49: #{tpu_custom_call.1} parent=1 // pred_fallthru
      _
    // Predicated region
    $region50: #{tpu_custom_call.1} parent=1 // pred_check
      _
    $region51: #{tpu_custom_call.1} parent=1 // pred_check_branch
      %874 = sbr.rel (0) target = $region53
    $region52: #{tpu_custom_call.1} parent=1 // pred_region
      %875 = dma.done [#allocation4], 16
    $region53: #{tpu_custom_call.1} parent=1 // pred_fallthru
      _
    %876 = vsyncpa [#allocation4], 1

// kernel: tpu_custom_call.1
$region0: #{tpu_custom_call.1}
  #allocation0 [shape = 'u32[]', space=smem, size = 0x4, offset = 0x4, fixed_abs, tag = 'smem constant byte address 0x4 - core index']
  #allocation1 [shape = 'u32[144,128]{1,0:T(1,128)}', space=vmem, size = 0x12000, scoped, tag = 'internal scratch']
  #allocation2 [shape = 'f32[1,1]{1,0:T(1,128)S(1)}', space=vmem, size = 0x200, scoped, tag = 'scoped memory for tpu_custom_call.1']
  %s0 = inlined_call_operand.vmem [shape: f32[1,128], index: 0, kind: input, shape index: {}]
  %s1 = inlined_call_operand.vmem [shape: f32[20,1], index: 1, kind: input, shape index: {}]
  %s2 = inlined_call_operand.vmem [shape: f32[20,1], index: 2, kind: input, shape index: {}]
  %s3 = inlined_call_operand.vmem [shape: f32[64,20], index: 3, kind: input, shape index: {}]
  %s4 = inlined_call_operand.vmem [shape: f32[64,1], index: 4, kind: input, shape index: {}]
  %s5 = inlined_call_operand.vmem [shape: f32[128,64], index: 5, kind: input, shape index: {}]
  %s6 = inlined_call_operand.vmem [shape: f32[128,1], index: 6, kind: input, shape index: {}]
  %s7 = inlined_call_operand.vmem [shape: f32[64,128], index: 7, kind: input, shape index: {}]
  %s8 = inlined_call_operand.vmem [shape: f32[64,1], index: 8, kind: input, shape index: {}]
  %s9 = inlined_call_operand.vmem [shape: f32[64,1], index: 9, kind: input, shape index: {}]
  %s10 = inlined_call_operand.<no memory space> [shape: f32[1,1], index: 10, kind: input, shape index: {}]
  %s11 = inlined_call_operand.hbm [shape: f32[1,128], index: 11, kind: output, shape index: {}]
  %s12 = sld [smem:[#allocation0]]
  $region54: #{tpu_custom_call.1} parent=0
    _
  %s14 = ssub.s32 1, %s12
  %s15 = scalar_select 0, %s14, %s12
  %v16 = vstv %s10
  %17 = vst [vmem:[#allocation2] sm:$0x1] %v16
  $region1: #{tpu_custom_call.1} parent=0
    #allocation3 [shape = 'u8[512]{0}', space=vmem, size = 0x400, scoped, tag = 'output window, operand 0, single buffered']
    #allocation4 [shape = 's32[1]{0}', space=sflag, size = 0x4, scoped, tag = 'scoped memory for tpu_custom_call.1']
    %18 = vsyncpa [#allocation4], 0
    // Predicated region
    $region2: #{tpu_custom_call.1} parent=1 // pred_check
      _
    $region3: #{tpu_custom_call.1} parent=1 // pred_check_branch
      %20 = sbr.rel (0) target = $region5
    $region4: #{tpu_custom_call.1} parent=1 // pred_region
      _
    $region5: #{tpu_custom_call.1} parent=1 // pred_fallthru
      _
    // Predicated region
    $region6: #{tpu_custom_call.1} parent=1 // pred_check
      _
    $region7: #{tpu_custom_call.1} parent=1 // pred_check_branch
      %22 = sbr.rel (0) target = $region9
    $region8: #{tpu_custom_call.1} parent=1 // pred_region
      _
    $region9: #{tpu_custom_call.1} parent=1 // pred_fallthru
      _
    // Predicated region
    $region10: #{tpu_custom_call.1} parent=1 // pred_check
      _
    $region11: #{tpu_custom_call.1} parent=1 // pred_check_branch
      %24 = sbr.rel (0) target = $region13
    $region12: #{tpu_custom_call.1} parent=1 // pred_region
      _
    $region13: #{tpu_custom_call.1} parent=1 // pred_fallthru
      _
    // Predicated region
    $region14: #{tpu_custom_call.1} parent=1 // pred_check
      _
    $region15: #{tpu_custom_call.1} parent=1 // pred_check_branch
      %26 = sbr.rel (0) target = $region17
    $region16: #{tpu_custom_call.1} parent=1 // pred_region
      _
    $region17: #{tpu_custom_call.1} parent=1 // pred_fallthru
      _
    // Predicated region
    $region18: #{tpu_custom_call.1} parent=1 // pred_check
      _
    $region19: #{tpu_custom_call.1} parent=1 // pred_check_branch
      %28 = sbr.rel (0) target = $region21
    $region20: #{tpu_custom_call.1} parent=1 // pred_region
      _
    $region21: #{tpu_custom_call.1} parent=1 // pred_fallthru
      _
    // Predicated region
    $region22: #{tpu_custom_call.1} parent=1 // pred_check
      _
    $region23: #{tpu_custom_call.1} parent=1 // pred_check_branch
      %30 = sbr.rel (0) target = $region25
    $region24: #{tpu_custom_call.1} parent=1 // pred_region
      _
    $region25: #{tpu_custom_call.1} parent=1 // pred_fallthru
      _
    // Predicated region
    $region26: #{tpu_custom_call.1} parent=1 // pred_check
      _
    $region27: #{tpu_custom_call.1} parent=1 // pred_check_branch
      %32 = sbr.rel (0) target = $region29
    $region28: #{tpu_custom_call.1} parent=1 // pred_region
      _
    $region29: #{tpu_custom_call.1} parent=1 // pred_fallthru
      _
    // Predicated region
    $region30: #{tpu_custom_call.1} parent=1 // pred_check
      _
    $region31: #{tpu_custom_call.1} parent=1 // pred_check_branch
      %34 = sbr.rel (0) target = $region33
    $region32: #{tpu_custom_call.1} parent=1 // pred_region
      _
    $region33: #{tpu_custom_call.1} parent=1 // pred_fallthru
      _
    // Predicated region
    $region34: #{tpu_custom_call.1} parent=1 // pred_check
      _
    $region35: #{tpu_custom_call.1} parent=1 // pred_check_branch
      %36 = sbr.rel (0) target = $region37
    $region36: #{tpu_custom_call.1} parent=1 // pred_region
      _
    $region37: #{tpu_custom_call.1} parent=1 // pred_fallthru
      _
    // Predicated region
    $region38: #{tpu_custom_call.1} parent=1 // pred_check
      _
    $region39: #{tpu_custom_call.1} parent=1 // pred_check_branch
      %38 = sbr.rel (0) target = $region41
    $region40: #{tpu_custom_call.1} parent=1 // pred_region
      _
    $region41: #{tpu_custom_call.1} parent=1 // pred_fallthru
      _
    // Predicated region
    $region42: #{tpu_custom_call.1} parent=1 // pred_check
      _
    $region43: #{tpu_custom_call.1} parent=1 // pred_check_branch
      %40 = sbr.rel (0) target = $region45
    $region44: #{tpu_custom_call.1} parent=1 // pred_region
      _
    $region45: #{tpu_custom_call.1} parent=1 // pred_fallthru
      _
    %v41 = vld [vmem:[%s0] sm:$0x1]
    %v42 = vld [vmem:[%s1] sm:$0xff]
    %v43 = vld [vmem:[%s1 + $0x8] sm:$0xff]
    %v44 = vld [vmem:[%s1 + $0x10] sm:$0xf]
    %46 = vset.pattern.permute.xlu0 0
    %47 = vperm.xlu0 %46, %v42
    %v48 = vpop.permute.xlu0 %47
    %51 = vset.pattern.permute.xlu0 0
    %52 = vperm.xlu0 %51, %v43
    %v53 = vpop.permute.xlu0 %52
    %56 = vset.pattern.permute.xlu0 0
    %57 = vperm.xlu0 %56, %v44
    %v58 = vpop.permute.xlu0 %57
    %v61 = vlaneseq
    %v62 = vshrl.u32 %v61, 7
    %v63 = vsub.s32 0, %v62
    %v64 = vrot.slane %v41, %v63
    %v66 = vmul.f32 %v48, %v64
    %v67 = vmul.f32 %v53, %v64
    %v68 = vmul.f32 %v58, %v64
    %v69 = vld [vmem:[%s2] sm:$0xff]
    %v70 = vld [vmem:[%s2 + $0x8] sm:$0xff]
    %v71 = vld [vmem:[%s2 + $0x10] sm:$0xf]
    %73 = vset.pattern.permute.xlu0 0
    %74 = vperm.xlu0 %73, %v69
    %v75 = vpop.permute.xlu0 %74
    %78 = vset.pattern.permute.xlu0 0
    %79 = vperm.xlu0 %78, %v70
    %v80 = vpop.permute.xlu0 %79
    %83 = vset.pattern.permute.xlu0 0
    %84 = vperm.xlu0 %83, %v71
    %v85 = vpop.permute.xlu0 %84
    %v87 = vadd.f32 %v66, %v75
    %v88 = vadd.f32 %v67, %v80
    %v89 = vadd.f32 %v68, %v85
    %v90 = vmax.f32 %v87, 0.0
    %v91 = vmax.f32 %v88, 0.0
    %v92 = vmax.f32 %v89, 0.0
    %v93 = vld [vmem:[%s3] sm:$0xff]
    %v94 = vld [vmem:[%s3 + $0x8] sm:$0xff]
    %v95 = vld [vmem:[%s3 + $0x10] sm:$0xff]
    %v96 = vld [vmem:[%s3 + $0x18] sm:$0xff]
    %v97 = vld [vmem:[%s3 + $0x20] sm:$0xff]
    %v98 = vld [vmem:[%s3 + $0x28] sm:$0xff]
    %v99 = vld [vmem:[%s3 + $0x30] sm:$0xff]
    %v100 = vld [vmem:[%s3 + $0x38] sm:$0xff]
    %v101 = vld [vmem:[%s4] sm:$0xff]
    %v102 = vld [vmem:[%s4 + $0x8] sm:$0xff]
    %v103 = vld [vmem:[%s4 + $0x10] sm:$0xff]
    %v104 = vld [vmem:[%s4 + $0x18] sm:$0xff]
    %v105 = vld [vmem:[%s4 + $0x20] sm:$0xff]
    %v106 = vld [vmem:[%s4 + $0x28] sm:$0xff]
    %v107 = vld [vmem:[%s4 + $0x30] sm:$0xff]
    %v108 = vld [vmem:[%s4 + $0x38] sm:$0xff]
    %110 = vset.pattern.permute.xlu0 0
    %111 = vperm.xlu0 %110, %v101
    %v112 = vpop.permute.xlu0 %111
    %115 = vset.pattern.permute.xlu0 0
    %116 = vperm.xlu0 %115, %v102
    %v117 = vpop.permute.xlu0 %116
    %120 = vset.pattern.permute.xlu0 0
    %121 = vperm.xlu0 %120, %v103
    %v122 = vpop.permute.xlu0 %121
    %125 = vset.pattern.permute.xlu0 0
    %126 = vperm.xlu0 %125, %v104
    %v127 = vpop.permute.xlu0 %126
    %130 = vset.pattern.permute.xlu0 0
    %131 = vperm.xlu0 %130, %v105
    %v132 = vpop.permute.xlu0 %131
    %135 = vset.pattern.permute.xlu0 0
    %136 = vperm.xlu0 %135, %v106
    %v137 = vpop.permute.xlu0 %136
    %140 = vset.pattern.permute.xlu0 0
    %141 = vperm.xlu0 %140, %v107
    %v142 = vpop.permute.xlu0 %141
    %145 = vset.pattern.permute.xlu0 0
    %146 = vperm.xlu0 %145, %v108
    %v147 = vpop.permute.xlu0 %146
    %vm149 = vcmask 162816
    %v151 = vsel %vm149, %v93, 0
    %v154 = vsel %vm149, %v94, 0
    %v157 = vsel %vm149, %v95, 0
    %v160 = vsel %vm149, %v96, 0
    %v163 = vsel %vm149, %v97, 0
    %v166 = vsel %vm149, %v98, 0
    %v169 = vsel %vm149, %v99, 0
    %v172 = vsel %vm149, %v100, 0
    %vm174 = vcmask 1043456
    %v176 = vsel %vm174, %v92, 0
    %178 = vmatprep.subr.mxu0 0.0
    %179 = vmatpush1.msra.mxu0 %v90
    %180 = vmatprep.subr.mxu0 0.0
    %181 = vmatpush1.msra.mxu0 %v91
    %182 = vmatprep.subr.mxu0 0.0
    %183 = vmatpush1.msra.mxu0 %v176
    %184 = vmatprep.subr.mxu0 0.0
    %185 = vmatpush1.msra.mxu0 0.0
    %186 = vmatprep.subr.mxu0 0.0
    %187 = vmatpush1.msra.mxu0 0.0
    %188 = vmatprep.subr.mxu0 0.0
    %189 = vmatpush1.msra.mxu0 0.0
    %190 = vmatprep.subr.mxu0 0.0
    %191 = vmatpush1.msra.mxu0 0.0
    %192 = vmatprep.subr.mxu0 0.0
    %193 = vmatpush1.msra.mxu0 0.0
    %194 = vmatprep.subr.mxu0 0.0
    %195 = vmatpush1.msra.mxu0 0.0
    %196 = vmatprep.subr.mxu0 0.0
    %197 = vmatpush1.msra.mxu0 0.0
    %198 = vmatprep.subr.mxu0 0.0
    %199 = vmatpush1.msra.mxu0 0.0
    %200 = vmatprep.subr.mxu0 0.0
    %201 = vmatpush1.msra.mxu0 0.0
    %202 = vmatprep.subr.mxu0 0.0
    %203 = vmatpush1.msra.mxu0 0.0
    %204 = vmatprep.subr.mxu0 0.0
    %205 = vmatpush1.msra.mxu0 0.0
    %206 = vmatprep.subr.mxu0 0.0
    %207 = vmatpush1.msra.mxu0 0.0
    %208 = vmatprep.subr.mxu0 0.0
    %209 = vmatpush1.msra.mxu0 0.0
    %210 = vmatprep.subr.mxu0 0.0
    %211 = vmatpush1.msra.mxu0 0.0
    %212 = vmatprep.subr.mxu0 0.0
    %213 = vmatpush1.msra.mxu0 0.0
    %214 = vmatprep.subr.mxu0 0.0
    %215 = vmatpush1.msra.mxu0 0.0
    %216 = vmatprep.subr.mxu0 0.0
    %217 = vmatpush1.msra.mxu0 0.0
    %218 = vmatprep.subr.mxu0 0.0
    %219 = vmatpush1.msra.mxu0 0.0
    %220 = vmatprep.subr.mxu0 0.0
    %221 = vmatpush1.msra.mxu0 0.0
    %222 = vmatprep.subr.mxu0 0.0
    %223 = vmatpush1.msra.mxu0 0.0
    %224 = vmatprep.subr.mxu0 0.0
    %225 = vmatpush1.msra.mxu0 0.0
    %226 = vmatprep.subr.mxu0 0.0
    %227 = vmatpush1.msra.mxu0 0.0
    %228 = vmatprep.subr.mxu0 0.0
    %229 = vmatpush1.msra.mxu0 0.0
    %230 = vmatprep.subr.mxu0 0.0
    %231 = vmatpush1.msra.mxu0 0.0
    %232 = vmatprep.subr.mxu0 0.0
    %233 = vmatpush1.msra.mxu0 0.0
    %234 = vmatprep.subr.mxu0 0.0
    %235 = vmatpush1.msra.mxu0 0.0
    %236 = vmatprep.subr.mxu0 0.0
    %237 = vmatpush1.msra.mxu0 0.0
    %238 = vmatprep.subr.mxu0 0.0
    %239 = vmatpush1.msra.mxu0 0.0
    %240 = vmatprep.subr.mxu0 0.0
    %241 = vmatpush1.msra.mxu0 0.0
    %242 = vmatprep.mubr.f32.mxu0 0.0
    %243 = vmatmul.mubr.f32.gmra.mrb[0].mxu0 %v151
    %v244 = vpop.f32.mrb[0].mxu0
    %v245 = vadd.f32 %v112, %v244
    %v246 = vpop.f32.mrb[0].mxu0
    %247 = vmatprep.mubr.f32.mxu0 0.0
    %248 = vmatmul.mubr.f32.gmra.mrb[0].mxu0 %v154
    %v249 = vpop.f32.mrb[0].mxu0
    %v250 = vadd.f32 %v117, %v249
    %v251 = vpop.f32.mrb[0].mxu0
    %252 = vmatprep.mubr.f32.mxu0 0.0
    %253 = vmatmul.mubr.f32.gmra.mrb[0].mxu0 %v157
    %v254 = vpop.f32.mrb[0].mxu0
    %v255 = vadd.f32 %v122, %v254
    %v256 = vpop.f32.mrb[0].mxu0
    %257 = vmatprep.mubr.f32.mxu0 0.0
    %258 = vmatmul.mubr.f32.gmra.mrb[0].mxu0 %v160
    %v259 = vpop.f32.mrb[0].mxu0
    %v260 = vadd.f32 %v127, %v259
    %v261 = vpop.f32.mrb[0].mxu0
    %262 = vmatprep.mubr.f32.mxu0 0.0
    %263 = vmatmul.mubr.f32.gmra.mrb[0].mxu0 %v163
    %v264 = vpop.f32.mrb[0].mxu0
    %v265 = vadd.f32 %v132, %v264
    %v266 = vpop.f32.mrb[0].mxu0
    %267 = vmatprep.mubr.f32.mxu0 0.0
    %268 = vmatmul.mubr.f32.gmra.mrb[0].mxu0 %v166
    %v269 = vpop.f32.mrb[0].mxu0
    %v270 = vadd.f32 %v137, %v269
    %v271 = vpop.f32.mrb[0].mxu0
    %272 = vmatprep.mubr.f32.mxu0 0.0
    %273 = vmatmul.mubr.f32.gmra.mrb[0].mxu0 %v169
    %v274 = vpop.f32.mrb[0].mxu0
    %v275 = vadd.f32 %v142, %v274
    %v276 = vpop.f32.mrb[0].mxu0
    %277 = vmatprep.mubr.f32.mxu0 0.0
    %278 = vmatmul.mubr.f32.gmra.mrb[0].mxu0 %v172
    %v279 = vpop.f32.mrb[0].mxu0
    %v280 = vadd.f32 %v147, %v279
    %v281 = vpop.f32.mrb[0].mxu0
    %282 = vdwg.mxu0
    %v283 = vmax.f32 %v245, 0.0
    %v284 = vmax.f32 %v250, 0.0
    %v285 = vmax.f32 %v255, 0.0
    %v286 = vmax.f32 %v260, 0.0
    %v287 = vmax.f32 %v265, 0.0
    %v288 = vmax.f32 %v270, 0.0
    %v289 = vmax.f32 %v275, 0.0
    %v290 = vmax.f32 %v280, 0.0
    %v291 = vld [vmem:[%s5] sm:$0xff]
    %v292 = vld [vmem:[%s5 + $0x8] sm:$0xff]
    %v293 = vld [vmem:[%s5 + $0x10] sm:$0xff]
    %v294 = vld [vmem:[%s5 + $0x18] sm:$0xff]
    %v295 = vld [vmem:[%s5 + $0x20] sm:$0xff]
    %v296 = vld [vmem:[%s5 + $0x28] sm:$0xff]
    %v297 = vld [vmem:[%s5 + $0x30] sm:$0xff]
    %v298 = vld [vmem:[%s5 + $0x38] sm:$0xff]
    %v299 = vld [vmem:[%s5 + $0x40] sm:$0xff]
    %v300 = vld [vmem:[%s5 + $0x48] sm:$0xff]
    %v301 = vld [vmem:[%s5 + $0x50] sm:$0xff]
    %v302 = vld [vmem:[%s5 + $0x58] sm:$0xff]
    %v303 = vld [vmem:[%s5 + $0x60] sm:$0xff]
    %v304 = vld [vmem:[%s5 + $0x68] sm:$0xff]
    %v305 = vld [vmem:[%s5 + $0x70] sm:$0xff]
    %v306 = vld [vmem:[%s5 + $0x78] sm:$0xff]
    %v307 = vld [vmem:[%s6] sm:$0xff]
    %v308 = vld [vmem:[%s6 + $0x8] sm:$0xff]
    %v309 = vld [vmem:[%s6 + $0x10] sm:$0xff]
    %v310 = vld [vmem:[%s6 + $0x18] sm:$0xff]
    %v311 = vld [vmem:[%s6 + $0x20] sm:$0xff]
    %v312 = vld [vmem:[%s6 + $0x28] sm:$0xff]
    %v313 = vld [vmem:[%s6 + $0x30] sm:$0xff]
    %v314 = vld [vmem:[%s6 + $0x38] sm:$0xff]
    %v315 = vld [vmem:[%s6 + $0x40] sm:$0xff]
    %v316 = vld [vmem:[%s6 + $0x48] sm:$0xff]
    %v317 = vld [vmem:[%s6 + $0x50] sm:$0xff]
    %v318 = vld [vmem:[%s6 + $0x58] sm:$0xff]
    %v319 = vld [vmem:[%s6 + $0x60] sm:$0xff]
    %v320 = vld [vmem:[%s6 + $0x68] sm:$0xff]
    %v321 = vld [vmem:[%s6 + $0x70] sm:$0xff]
    %v322 = vld [vmem:[%s6 + $0x78] sm:$0xff]
    %324 = vset.pattern.permute.xlu0 0
    %325 = vperm.xlu0 %324, %v307
    %v326 = vpop.permute.xlu0 %325
    %329 = vset.pattern.permute.xlu0 0
    %330 = vperm.xlu0 %329, %v308
    %v331 = vpop.permute.xlu0 %330
    %334 = vset.pattern.permute.xlu0 0
    %335 = vperm.xlu0 %334, %v309
    %v336 = vpop.permute.xlu0 %335
    %339 = vset.pattern.permute.xlu0 0
    %340 = vperm.xlu0 %339, %v310
    %v341 = vpop.permute.xlu0 %340
    %344 = vset.pattern.permute.xlu0 0
    %345 = vperm.xlu0 %344, %v311
    %v346 = vpop.permute.xlu0 %345
    %349 = vset.pattern.permute.xlu0 0
    %350 = vperm.xlu0 %349, %v312
    %v351 = vpop.permute.xlu0 %350
    %354 = vset.pattern.permute.xlu0 0
    %355 = vperm.xlu0 %354, %v313
    %v356 = vpop.permute.xlu0 %355
    %359 = vset.pattern.permute.xlu0 0
    %360 = vperm.xlu0 %359, %v314
    %v361 = vpop.permute.xlu0 %360
    %364 = vset.pattern.permute.xlu0 0
    %365 = vperm.xlu0 %364, %v315
    %v366 = vpop.permute.xlu0 %365
    %369 = vset.pattern.permute.xlu0 0
    %370 = vperm.xlu0 %369, %v316
    %v371 = vpop.permute.xlu0 %370
    %374 = vset.pattern.permute.xlu0 0
    %375 = vperm.xlu0 %374, %v317
    %v376 = vpop.permute.xlu0 %375
    %379 = vset.pattern.permute.xlu0 0
    %380 = vperm.xlu0 %379, %v318
    %v381 = vpop.permute.xlu0 %380
    %384 = vset.pattern.permute.xlu0 0
    %385 = vperm.xlu0 %384, %v319
    %v386 = vpop.permute.xlu0 %385
    %389 = vset.pattern.permute.xlu0 0
    %390 = vperm.xlu0 %389, %v320
    %v391 = vpop.permute.xlu0 %390
    %394 = vset.pattern.permute.xlu0 0
    %395 = vperm.xlu0 %394, %v321
    %v396 = vpop.permute.xlu0 %395
    %399 = vset.pattern.permute.xlu0 0
    %400 = vperm.xlu0 %399, %v322
    %v401 = vpop.permute.xlu0 %400
    %vm403 = vcmask 523264
    %v405 = vsel %vm403, %v291, 0
    %v408 = vsel %vm403, %v292, 0
    %v411 = vsel %vm403, %v293, 0
    %v414 = vsel %vm403, %v294, 0
    %v417 = vsel %vm403, %v295, 0
    %v420 = vsel %vm403, %v296, 0
    %v423 = vsel %vm403, %v297, 0
    %v426 = vsel %vm403, %v298, 0
    %v429 = vsel %vm403, %v299, 0
    %v432 = vsel %vm403, %v300, 0
    %v435 = vsel %vm403, %v301, 0
    %v438 = vsel %vm403, %v302, 0
    %v441 = vsel %vm403, %v303, 0
    %v444 = vsel %vm403, %v304, 0
    %v447 = vsel %vm403, %v305, 0
    %v450 = vsel %vm403, %v306, 0
    %452 = vmatprep.subr.mxu0 0.0
    %453 = vmatpush1.msra.mxu0 %v283
    %454 = vmatprep.subr.mxu0 0.0
    %455 = vmatpush1.msra.mxu0 %v284
    %456 = vmatprep.subr.mxu0 0.0
    %457 = vmatpush1.msra.mxu0 %v285
    %458 = vmatprep.subr.mxu0 0.0
    %459 = vmatpush1.msra.mxu0 %v286
    %460 = vmatprep.subr.mxu0 0.0
    %461 = vmatpush1.msra.mxu0 %v287
    %462 = vmatprep.subr.mxu0 0.0
    %463 = vmatpush1.msra.mxu0 %v288
    %464 = vmatprep.subr.mxu0 0.0
    %465 = vmatpush1.msra.mxu0 %v289
    %466 = vmatprep.subr.mxu0 0.0
    %467 = vmatpush1.msra.mxu0 %v290
    %468 = vmatprep.subr.mxu0 0.0
    %469 = vmatpush1.msra.mxu0 0.0
    %470 = vmatprep.subr.mxu0 0.0
    %471 = vmatpush1.msra.mxu0 0.0
    %472 = vmatprep.subr.mxu0 0.0
    %473 = vmatpush1.msra.mxu0 0.0
    %474 = vmatprep.subr.mxu0 0.0
    %475 = vmatpush1.msra.mxu0 0.0
    %476 = vmatprep.subr.mxu0 0.0
    %477 = vmatpush1.msra.mxu0 0.0
    %478 = vmatprep.subr.mxu0 0.0
    %479 = vmatpush1.msra.mxu0 0.0
    %480 = vmatprep.subr.mxu0 0.0
    %481 = vmatpush1.msra.mxu0 0.0
    %482 = vmatprep.subr.mxu0 0.0
    %483 = vmatpush1.msra.mxu0 0.0
    %484 = vmatprep.subr.mxu0 0.0
    %485 = vmatpush1.msra.mxu0 0.0
    %486 = vmatprep.subr.mxu0 0.0
    %487 = vmatpush1.msra.mxu0 0.0
    %488 = vmatprep.subr.mxu0 0.0
    %489 = vmatpush1.msra.mxu0 0.0
    %490 = vmatprep.subr.mxu0 0.0
    %491 = vmatpush1.msra.mxu0 0.0
    %492 = vmatprep.subr.mxu0 0.0
    %493 = vmatpush1.msra.mxu0 0.0
    %494 = vmatprep.subr.mxu0 0.0
    %495 = vmatpush1.msra.mxu0 0.0
    %496 = vmatprep.subr.mxu0 0.0
    %497 = vmatpush1.msra.mxu0 0.0
    %498 = vmatprep.subr.mxu0 0.0
    %499 = vmatpush1.msra.mxu0 0.0
    %500 = vmatprep.subr.mxu0 0.0
    %501 = vmatpush1.msra.mxu0 0.0
    %502 = vmatprep.subr.mxu0 0.0
    %503 = vmatpush1.msra.mxu0 0.0
    %504 = vmatprep.subr.mxu0 0.0
    %505 = vmatpush1.msra.mxu0 0.0
    %506 = vmatprep.subr.mxu0 0.0
    %507 = vmatpush1.msra.mxu0 0.0
    %508 = vmatprep.subr.mxu0 0.0
    %509 = vmatpush1.msra.mxu0 0.0
    %510 = vmatprep.subr.mxu0 0.0
    %511 = vmatpush1.msra.mxu0 0.0
    %512 = vmatprep.subr.mxu0 0.0
    %513 = vmatpush1.msra.mxu0 0.0
    %514 = vmatprep.subr.mxu0 0.0
    %515 = vmatpush1.msra.mxu0 0.0
    %516 = vmatprep.mubr.f32.mxu0 0.0
    %517 = vmatmul.mubr.f32.gmra.mrb[0].mxu0 %v405
    %v518 = vpop.f32.mrb[0].mxu0
    %v519 = vadd.f32 %v326, %v518
    %v520 = vpop.f32.mrb[0].mxu0
    %521 = vmatprep.mubr.f32.mxu0 0.0
    %522 = vmatmul.mubr.f32.gmra.mrb[0].mxu0 %v408
    %v523 = vpop.f32.mrb[0].mxu0
    %v524 = vadd.f32 %v331, %v523
    %v525 = vpop.f32.mrb[0].mxu0
    %526 = vmatprep.mubr.f32.mxu0 0.0
    %527 = vmatmul.mubr.f32.gmra.mrb[0].mxu0 %v411
    %v528 = vpop.f32.mrb[0].mxu0
    %v529 = vadd.f32 %v336, %v528
    %v530 = vpop.f32.mrb[0].mxu0
    %531 = vmatprep.mubr.f32.mxu0 0.0
    %532 = vmatmul.mubr.f32.gmra.mrb[0].mxu0 %v414
    %v533 = vpop.f32.mrb[0].mxu0
    %v534 = vadd.f32 %v341, %v533
    %v535 = vpop.f32.mrb[0].mxu0
    %536 = vmatprep.mubr.f32.mxu0 0.0
    %537 = vmatmul.mubr.f32.gmra.mrb[0].mxu0 %v417
    %v538 = vpop.f32.mrb[0].mxu0
    %v539 = vadd.f32 %v346, %v538
    %v540 = vpop.f32.mrb[0].mxu0
    %541 = vmatprep.mubr.f32.mxu0 0.0
    %542 = vmatmul.mubr.f32.gmra.mrb[0].mxu0 %v420
    %v543 = vpop.f32.mrb[0].mxu0
    %v544 = vadd.f32 %v351, %v543
    %v545 = vpop.f32.mrb[0].mxu0
    %546 = vmatprep.mubr.f32.mxu0 0.0
    %547 = vmatmul.mubr.f32.gmra.mrb[0].mxu0 %v423
    %v548 = vpop.f32.mrb[0].mxu0
    %v549 = vadd.f32 %v356, %v548
    %v550 = vpop.f32.mrb[0].mxu0
    %551 = vmatprep.mubr.f32.mxu0 0.0
    %552 = vmatmul.mubr.f32.gmra.mrb[0].mxu0 %v426
    %v553 = vpop.f32.mrb[0].mxu0
    %v554 = vadd.f32 %v361, %v553
    %v555 = vpop.f32.mrb[0].mxu0
    %556 = vmatprep.mubr.f32.mxu0 0.0
    %557 = vmatmul.mubr.f32.gmra.mrb[0].mxu0 %v429
    %v558 = vpop.f32.mrb[0].mxu0
    %v559 = vadd.f32 %v366, %v558
    %v560 = vpop.f32.mrb[0].mxu0
    %561 = vmatprep.mubr.f32.mxu0 0.0
    %562 = vmatmul.mubr.f32.gmra.mrb[0].mxu0 %v432
    %v563 = vpop.f32.mrb[0].mxu0
    %v564 = vadd.f32 %v371, %v563
    %v565 = vpop.f32.mrb[0].mxu0
    %566 = vmatprep.mubr.f32.mxu0 0.0
    %567 = vmatmul.mubr.f32.gmra.mrb[0].mxu0 %v435
    %v568 = vpop.f32.mrb[0].mxu0
    %v569 = vadd.f32 %v376, %v568
    %v570 = vpop.f32.mrb[0].mxu0
    %571 = vmatprep.mubr.f32.mxu0 0.0
    %572 = vmatmul.mubr.f32.gmra.mrb[0].mxu0 %v438
    %v573 = vpop.f32.mrb[0].mxu0
    %v574 = vadd.f32 %v381, %v573
    %v575 = vpop.f32.mrb[0].mxu0
    %576 = vmatprep.mubr.f32.mxu0 0.0
    %577 = vmatmul.mubr.f32.gmra.mrb[0].mxu0 %v441
    %v578 = vpop.f32.mrb[0].mxu0
    %v579 = vadd.f32 %v386, %v578
    %v580 = vpop.f32.mrb[0].mxu0
    %581 = vmatprep.mubr.f32.mxu0 0.0
    %582 = vmatmul.mubr.f32.gmra.mrb[0].mxu0 %v444
    %v583 = vpop.f32.mrb[0].mxu0
    %v584 = vadd.f32 %v391, %v583
    %v585 = vpop.f32.mrb[0].mxu0
    %586 = vmatprep.mubr.f32.mxu0 0.0
    %587 = vmatmul.mubr.f32.gmra.mrb[0].mxu0 %v447
    %v588 = vpop.f32.mrb[0].mxu0
    %v589 = vadd.f32 %v396, %v588
    %v590 = vpop.f32.mrb[0].mxu0
    %591 = vmatprep.mubr.f32.mxu0 0.0
    %592 = vmatmul.mubr.f32.gmra.mrb[0].mxu0 %v450
    %v593 = vpop.f32.mrb[0].mxu0
    %v594 = vadd.f32 %v401, %v593
    %v595 = vpop.f32.mrb[0].mxu0
    %596 = vdwg.mxu0
    %v597 = vmax.f32 %v519, 0.0
    %v598 = vmax.f32 %v524, 0.0
    %v599 = vmax.f32 %v529, 0.0
    %v600 = vmax.f32 %v534, 0.0
    %v601 = vmax.f32 %v539, 0.0
    %v602 = vmax.f32 %v544, 0.0
    %v603 = vmax.f32 %v549, 0.0
    %v604 = vmax.f32 %v554, 0.0
    %v605 = vmax.f32 %v559, 0.0
    %v606 = vmax.f32 %v564, 0.0
    %v607 = vmax.f32 %v569, 0.0
    %v608 = vmax.f32 %v574, 0.0
    %v609 = vmax.f32 %v579, 0.0
    %v610 = vmax.f32 %v584, 0.0
    %v611 = vmax.f32 %v589, 0.0
    %v612 = vmax.f32 %v594, 0.0
    %v613 = vld [vmem:[%s7] sm:$0xff]
    %v614 = vld [vmem:[%s7 + $0x8] sm:$0xff]
    %v615 = vld [vmem:[%s7 + $0x10] sm:$0xff]
    %v616 = vld [vmem:[%s7 + $0x18] sm:$0xff]
    %v617 = vld [vmem:[%s7 + $0x20] sm:$0xff]
    %v618 = vld [vmem:[%s7 + $0x28] sm:$0xff]
    %v619 = vld [vmem:[%s7 + $0x30] sm:$0xff]
    %v620 = vld [vmem:[%s7 + $0x38] sm:$0xff]
    %v621 = vld [vmem:[%s8] sm:$0xff]
    %v622 = vld [vmem:[%s8 + $0x8] sm:$0xff]
    %v623 = vld [vmem:[%s8 + $0x10] sm:$0xff]
    %v624 = vld [vmem:[%s8 + $0x18] sm:$0xff]
    %v625 = vld [vmem:[%s8 + $0x20] sm:$0xff]
    %v626 = vld [vmem:[%s8 + $0x28] sm:$0xff]
    %v627 = vld [vmem:[%s8 + $0x30] sm:$0xff]
    %v628 = vld [vmem:[%s8 + $0x38] sm:$0xff]
    %630 = vset.pattern.permute.xlu0 0
    %631 = vperm.xlu0 %630, %v621
    %v632 = vpop.permute.xlu0 %631
    %635 = vset.pattern.permute.xlu0 0
    %636 = vperm.xlu0 %635, %v622
    %v637 = vpop.permute.xlu0 %636
    %640 = vset.pattern.permute.xlu0 0
    %641 = vperm.xlu0 %640, %v623
    %v642 = vpop.permute.xlu0 %641
    %645 = vset.pattern.permute.xlu0 0
    %646 = vperm.xlu0 %645, %v624
    %v647 = vpop.permute.xlu0 %646
    %650 = vset.pattern.permute.xlu0 0
    %651 = vperm.xlu0 %650, %v625
    %v652 = vpop.permute.xlu0 %651
    %655 = vset.pattern.permute.xlu0 0
    %656 = vperm.xlu0 %655, %v626
    %v657 = vpop.permute.xlu0 %656
    %660 = vset.pattern.permute.xlu0 0
    %661 = vperm.xlu0 %660, %v627
    %v662 = vpop.permute.xlu0 %661
    %665 = vset.pattern.permute.xlu0 0
    %666 = vperm.xlu0 %665, %v628
    %v667 = vpop.permute.xlu0 %666
    %669 = vmatprep.subr.mxu0 0.0
    %670 = vmatpush1.msra.mxu0 %v597
    %671 = vmatprep.subr.mxu0 0.0
    %672 = vmatpush1.msra.mxu0 %v598
    %673 = vmatprep.subr.mxu0 0.0
    %674 = vmatpush1.msra.mxu0 %v599
    %675 = vmatprep.subr.mxu0 0.0
    %676 = vmatpush1.msra.mxu0 %v600
    %677 = vmatprep.subr.mxu0 0.0
    %678 = vmatpush1.msra.mxu0 %v601
    %679 = vmatprep.subr.mxu0 0.0
    %680 = vmatpush1.msra.mxu0 %v602
    %681 = vmatprep.subr.mxu0 0.0
    %682 = vmatpush1.msra.mxu0 %v603
    %683 = vmatprep.subr.mxu0 0.0
    %684 = vmatpush1.msra.mxu0 %v604
    %685 = vmatprep.subr.mxu0 0.0
    %686 = vmatpush1.msra.mxu0 %v605
    %687 = vmatprep.subr.mxu0 0.0
    %688 = vmatpush1.msra.mxu0 %v606
    %689 = vmatprep.subr.mxu0 0.0
    %690 = vmatpush1.msra.mxu0 %v607
    %691 = vmatprep.subr.mxu0 0.0
    %692 = vmatpush1.msra.mxu0 %v608
    %693 = vmatprep.subr.mxu0 0.0
    %694 = vmatpush1.msra.mxu0 %v609
    %695 = vmatprep.subr.mxu0 0.0
    %696 = vmatpush1.msra.mxu0 %v610
    %697 = vmatprep.subr.mxu0 0.0
    %698 = vmatpush1.msra.mxu0 %v611
    %699 = vmatprep.subr.mxu0 0.0
    %700 = vmatpush1.msra.mxu0 %v612
    %701 = vmatprep.subr.mxu0 0.0
    %702 = vmatpush1.msra.mxu0 0.0
    %703 = vmatprep.subr.mxu0 0.0
    %704 = vmatpush1.msra.mxu0 0.0
    %705 = vmatprep.subr.mxu0 0.0
    %706 = vmatpush1.msra.mxu0 0.0
    %707 = vmatprep.subr.mxu0 0.0
    %708 = vmatpush1.msra.mxu0 0.0
    %709 = vmatprep.subr.mxu0 0.0
    %710 = vmatpush1.msra.mxu0 0.0
    %711 = vmatprep.subr.mxu0 0.0
    %712 = vmatpush1.msra.mxu0 0.0
    %713 = vmatprep.subr.mxu0 0.0
    %714 = vmatpush1.msra.mxu0 0.0
    %715 = vmatprep.subr.mxu0 0.0
    %716 = vmatpush1.msra.mxu0 0.0
    %717 = vmatprep.subr.mxu0 0.0
    %718 = vmatpush1.msra.mxu0 0.0
    %719 = vmatprep.subr.mxu0 0.0
    %720 = vmatpush1.msra.mxu0 0.0
    %721 = vmatprep.subr.mxu0 0.0
    %722 = vmatpush1.msra.mxu0 0.0
    %723 = vmatprep.subr.mxu0 0.0
    %724 = vmatpush1.msra.mxu0 0.0
    %725 = vmatprep.subr.mxu0 0.0
    %726 = vmatpush1.msra.mxu0 0.0
    %727 = vmatprep.subr.mxu0 0.0
    %728 = vmatpush1.msra.mxu0 0.0
    %729 = vmatprep.subr.mxu0 0.0
    %730 = vmatpush1.msra.mxu0 0.0
    %731 = vmatprep.subr.mxu0 0.0
    %732 = vmatpush1.msra.mxu0 0.0
    %733 = vmatprep.mubr.f32.mxu0 0.0
    %734 = vmatmul.mubr.f32.gmra.mrb[0].mxu0 %v613
    %v735 = vpop.f32.mrb[0].mxu0
    %v736 = vadd.f32 %v632, %v735
    %v737 = vpop.f32.mrb[0].mxu0
    %738 = vmatprep.mubr.f32.mxu0 0.0
    %739 = vmatmul.mubr.f32.gmra.mrb[0].mxu0 %v614
    %v740 = vpop.f32.mrb[0].mxu0
    %v741 = vadd.f32 %v637, %v740
    %v742 = vpop.f32.mrb[0].mxu0
    %743 = vmatprep.mubr.f32.mxu0 0.0
    %744 = vmatmul.mubr.f32.gmra.mrb[0].mxu0 %v615
    %v745 = vpop.f32.mrb[0].mxu0
    %v746 = vadd.f32 %v642, %v745
    %v747 = vpop.f32.mrb[0].mxu0
    %748 = vmatprep.mubr.f32.mxu0 0.0
    %749 = vmatmul.mubr.f32.gmra.mrb[0].mxu0 %v616
    %v750 = vpop.f32.mrb[0].mxu0
    %v751 = vadd.f32 %v647, %v750
    %v752 = vpop.f32.mrb[0].mxu0
    %753 = vmatprep.mubr.f32.mxu0 0.0
    %754 = vmatmul.mubr.f32.gmra.mrb[0].mxu0 %v617
    %v755 = vpop.f32.mrb[0].mxu0
    %v756 = vadd.f32 %v652, %v755
    %v757 = vpop.f32.mrb[0].mxu0
    %758 = vmatprep.mubr.f32.mxu0 0.0
    %759 = vmatmul.mubr.f32.gmra.mrb[0].mxu0 %v618
    %v760 = vpop.f32.mrb[0].mxu0
    %v761 = vadd.f32 %v657, %v760
    %v762 = vpop.f32.mrb[0].mxu0
    %763 = vmatprep.mubr.f32.mxu0 0.0
    %764 = vmatmul.mubr.f32.gmra.mrb[0].mxu0 %v619
    %v765 = vpop.f32.mrb[0].mxu0
    %v766 = vadd.f32 %v662, %v765
    %v767 = vpop.f32.mrb[0].mxu0
    %768 = vmatprep.mubr.f32.mxu0 0.0
    %769 = vmatmul.mubr.f32.gmra.mrb[0].mxu0 %v620
    %v770 = vpop.f32.mrb[0].mxu0
    %v771 = vadd.f32 %v667, %v770
    %v772 = vpop.f32.mrb[0].mxu0
    %773 = vdwg.mxu0
    %v774 = vmax.f32 %v736, 0.0
    %v775 = vmax.f32 %v741, 0.0
    %v776 = vmax.f32 %v746, 0.0
    %v777 = vmax.f32 %v751, 0.0
    %v778 = vmax.f32 %v756, 0.0
    %v779 = vmax.f32 %v761, 0.0
    %v780 = vmax.f32 %v766, 0.0
    %v781 = vmax.f32 %v771, 0.0
    %v782 = vld [vmem:[%s9] sm:$0xff]
    %v783 = vld [vmem:[%s9 + $0x8] sm:$0xff]
    %v784 = vld [vmem:[%s9 + $0x10] sm:$0xff]
    %v785 = vld [vmem:[%s9 + $0x18] sm:$0xff]
    %v786 = vld [vmem:[%s9 + $0x20] sm:$0xff]
    %v787 = vld [vmem:[%s9 + $0x28] sm:$0xff]
    %v788 = vld [vmem:[%s9 + $0x30] sm:$0xff]
    %v789 = vld [vmem:[%s9 + $0x38] sm:$0xff]
    %791 = vset.pattern.permute.xlu0 0
    %792 = vperm.xlu0 %791, %v782
    %v793 = vpop.permute.xlu0 %792
    %796 = vset.pattern.permute.xlu0 0
    %797 = vperm.xlu0 %796, %v783
    %v798 = vpop.permute.xlu0 %797
    %801 = vset.pattern.permute.xlu0 0
    %802 = vperm.xlu0 %801, %v784
    %v803 = vpop.permute.xlu0 %802
    %806 = vset.pattern.permute.xlu0 0
    %807 = vperm.xlu0 %806, %v785
    %v808 = vpop.permute.xlu0 %807
    %811 = vset.pattern.permute.xlu0 0
    %812 = vperm.xlu0 %811, %v786
    %v813 = vpop.permute.xlu0 %812
    %816 = vset.pattern.permute.xlu0 0
    %817 = vperm.xlu0 %816, %v787
    %v818 = vpop.permute.xlu0 %817
    %821 = vset.pattern.permute.xlu0 0
    %822 = vperm.xlu0 %821, %v788
    %v823 = vpop.permute.xlu0 %822
    %826 = vset.pattern.permute.xlu0 0
    %827 = vperm.xlu0 %826, %v789
    %v828 = vpop.permute.xlu0 %827
    %v830 = vmul.f32 %v793, %v774
    %v831 = vmul.f32 %v798, %v775
    %v832 = vmul.f32 %v803, %v776
    %v833 = vmul.f32 %v808, %v777
    %v834 = vmul.f32 %v813, %v778
    %v835 = vmul.f32 %v818, %v779
    %v836 = vmul.f32 %v823, %v780
    %v837 = vmul.f32 %v828, %v781
    %v838 = vadd.f32 %v830, %v831
    %v839 = vadd.f32 %v838, %v832
    %v840 = vadd.f32 %v839, %v833
    %v841 = vadd.f32 %v840, %v834
    %v842 = vadd.f32 %v841, %v835
    %v843 = vadd.f32 %v842, %v836
    %v844 = vadd.f32 %v843, %v837
    %v845 = vrot.slane %v844, 4
    %v846 = vadd.f32 %v844, %v845
    %v847 = vrot.slane %v846, 2
    %v848 = vadd.f32 %v846, %v847
    %v849 = vrot.slane %v848, 1
    %v850 = vadd.f32 %v848, %v849
    %v851 = vld [vmem:[#allocation2] sm:$0x1]
    %853 = vset.pattern.permute.xlu0 0
    %854 = vperm.xlu0 %853, %v851
    %v855 = vpop.permute.xlu0 %854
    %v857 = vlaneseq
    %v858 = vshrl.u32 %v857, 7
    %v859 = vsub.s32 0, %v858
    %v860 = vrot.slane %v855, %v859
    %v861 = vadd.f32 %v850, %v860
    %862 = vst [vmem:[#allocation3] sm:$0x1] %v861
    // Predicated region
    $region46: #{tpu_custom_call.1} parent=1 // pred_check
      _
    $region47: #{tpu_custom_call.1} parent=1 // pred_check_branch
      %864 = sbr.rel (0) target = $region49
    $region48: #{tpu_custom_call.1} parent=1 // pred_region
      %s866 = ssub.s32 16, 16
      %867 = vsyncadd [#allocation4], %s866
      %s869 = sshll.u32 [#allocation3], 4
      %s870 = int_to_ptr.vmem [resolvable:$true] %s869
      %872 = dma.vmem_to_hbm [thread:$0]  %s870, 16, %s11, [#allocation4]
    $region49: #{tpu_custom_call.1} parent=1 // pred_fallthru
      _
    // Predicated region
    $region50: #{tpu_custom_call.1} parent=1 // pred_check
      _
    $region51: #{tpu_custom_call.1} parent=1 // pred_check_branch
      %874 = sbr.rel (0) target = $region53
    $region52: #{tpu_custom_call.1} parent=1 // pred_region
      %875 = dma.done [#allocation4], 16
    $region53: #{tpu_custom_call.1} parent=1 // pred_fallthru
      _
    %876 = vsyncpa [#allocation4], 1

</llo_original>
